<compile_context>
chip_gen: v6e
topology: v6e:2x2x1
jax: 0.10.0
libtpu: 0.0.40
codegen_flags: <defaults>
</compile_context>

<pallas_src>
import functools

import jax
import jax.numpy as jnp
from jax.experimental import pallas as pl
from jax.experimental.pallas import tpu as pltpu

AP_SIZE = 5
H1, H2, HH = 512, 256, 128        # shared layer widths, per-head hidden width
OUT_PAD = 128                      # lane-dense padded output width


def _round_up(n, m):
    return (n + m - 1) // m * m


def actor_kernel(x_ref, w1_ref, b1_ref, w2_ref, b2_ref,
                 hw1_ref, hb1_ref, hw2_ref, hb2_ref, out_ref):
    wdt = w1_ref.dtype                      # bf16 (default) or f32 weights
    x = x_ref[...].astype(wdt)              # (tm, state_dim), K=32 contraction

    # Shared trunk.
    h1 = jnp.dot(x, w1_ref[...], preferred_element_type=jnp.float32) + b1_ref[...]
    h1 = jnp.maximum(h1, 0.0)
    h2 = jnp.dot(h1.astype(wdt), w2_ref[...],
                 preferred_element_type=jnp.float32) + b2_ref[...]
    h2 = jnp.maximum(h2, 0.0)

    # All 5 heads, first layer fused: (tm,256) @ (256,640).
    hh = jnp.dot(h2.astype(wdt), hw1_ref[...],
                 preferred_element_type=jnp.float32) + hb1_ref[...]
    hh = jnp.maximum(hh, 0.0)

    # All 5 heads, second layer as one block-diagonal matmul: (tm,640) @ (640,128).
    # Columns 5..127 are exactly zero-padded and sliced off in the wrapper.
    logits = jnp.dot(hh.astype(wdt), hw2_ref[...],
                     preferred_element_type=jnp.float32) + hb2_ref[...]
    out_ref[...] = jax.nn.sigmoid(logits).astype(out_ref.dtype)


def pack_params(params, param_dtype=jnp.bfloat16):
    """Wrapper-side packing: fuse per-head weights.  bf16 weights by default;
    biases stay f32 (added to the f32 accumulators)."""
    (w1, b1, w2, b2, hw1, hb1, hw2, hb2) = params

    # Heads, first layer: (AP,256,128) -> (256, AP*128).
    hw1p = jnp.transpose(hw1, (1, 0, 2)).reshape(H2, AP_SIZE * HH)
    hb1p = hb1.reshape(1, AP_SIZE * HH)

    # Heads, second layer: block-diagonal (AP*128, OUT_PAD), exact zeros in padding.
    hw2p = jnp.zeros((AP_SIZE * HH, OUT_PAD), jnp.float32)
    for i in range(AP_SIZE):
        hw2p = hw2p.at[i * HH:(i + 1) * HH, i].set(hw2[i])
    hb2p = jnp.zeros((1, OUT_PAD), jnp.float32).at[:, :AP_SIZE].set(hb2)

    return (w1.astype(param_dtype), b1.astype(jnp.float32),
            w2.astype(param_dtype), b2.astype(jnp.float32),
            hw1p.astype(param_dtype), hb1p.astype(jnp.float32),
            hw2p.astype(param_dtype), hb2p.astype(jnp.float32))


def _choose_tm(batch, block_batch):
    if batch <= 512:
        return min(_round_up(max(batch, 8), 8), block_batch)
    # >= 2 grid steps (v7x: shard batch across both TensorCores), rows in
    # multiples of 256 to fill the MXU M dimension on v6e/v7x.
    return max(256, min(block_batch, _round_up(pl.cdiv(batch, 2), 256)))


@functools.partial(jax.jit, static_argnames=("block_batch", "out_dtype"))
def actor_forward(x, packed_params, *, block_batch=1024, out_dtype=jnp.float32):
    (w1p, b1, w2, b2, hw1p, hb1p, hw2p, hb2p) = packed_params
    B, state_dim = x.shape

    tm = _choose_tm(B, block_batch)
    grid = (pl.cdiv(B, tm),)          # ragged last block handled by Pallas

    weight_args = (w1p, b1, w2, b2, hw1p, hb1p, hw2p, hb2p)

    def const_spec(a):
        # Constant block index -> weights stay resident in VMEM across steps.
        return pl.BlockSpec(a.shape, lambda i: (0,) * a.ndim)

    flops = 2 * B * (state_dim * H1 + H1 * H2 + H2 * AP_SIZE * HH
                     + AP_SIZE * HH * OUT_PAD)
    bytes_accessed = (int(x.size) * x.dtype.itemsize
                      + B * OUT_PAD * jnp.dtype(out_dtype).itemsize
                      + sum(int(a.size) * a.dtype.itemsize for a in weight_args))

    out = pl.pallas_call(
        actor_kernel,
        out_shape=jax.ShapeDtypeStruct((B, OUT_PAD), out_dtype),
        grid=grid,
        in_specs=[pl.BlockSpec((tm, state_dim), lambda i: (i, 0))]
                 + [const_spec(a) for a in weight_args],
        out_specs=pl.BlockSpec((tm, OUT_PAD), lambda i: (i, 0)),
        compiler_params=pltpu.CompilerParams(
            dimension_semantics=("parallel",),
            vmem_limit_bytes=64 * 1024 * 1024),
        cost_estimate=pl.CostEstimate(
            flops=flops,
            transcendentals=B * OUT_PAD,
            bytes_accessed=bytes_accessed),
    )(x, *weight_args)

    return out[:, :AP_SIZE]


def init_params(key, state_dim):
    ks = jax.random.split(key, 8)

    def lin(k, fan_in, shape):
        bound = 1.0 / jnp.sqrt(fan_in)
        return jax.random.uniform(k, shape, jnp.float32, -bound, bound)

    w1 = lin(ks[0], state_dim, (state_dim, 512))
    b1 = lin(ks[1], state_dim, (1, 512))
    w2 = lin(ks[2], 512, (512, 256))
    b2 = lin(ks[3], 512, (1, 256))
    hw1 = lin(ks[4], 256, (AP_SIZE, 256, 128))
    hb1 = lin(ks[5], 256, (AP_SIZE, 128))
    hw2 = lin(ks[6], 128, (AP_SIZE, 128))    # Linear(128,1) weight per head, as a row
    hb2 = lin(ks[7], 128, (1, AP_SIZE))
    return (w1, b1, w2, b2, hw1, hb1, hw2, hb2)


def actor_ref(x, params):
    (w1, b1, w2, b2, hw1, hb1, hw2, hb2) = params
    h = jnp.maximum(x @ w1 + b1, 0.0)
    h = jnp.maximum(h @ w2 + b2, 0.0)
    cols = []
    for i in range(AP_SIZE):
        hh = jnp.maximum(h @ hw1[i] + hb1[i][None, :], 0.0)
        cols.append(jax.nn.sigmoid(hh @ hw2[i] + hb2[0, i]))
    return jnp.stack(cols, axis=1)


if __name__ == "__main__":
    key = jax.random.PRNGKey(0)
    k_x, k_p = jax.random.split(key)
    state_dim, batch = 32, 8
    x = jax.random.normal(k_x, (batch, state_dim), jnp.float32)
    params = init_params(k_p, state_dim)
    ref = actor_ref(x, params)

    # f32 weight path: tight check against the pure-JAX reference.
    packed_f32 = pack_params(params, jnp.float32)
    out_f32 = jax.block_until_ready(actor_forward(x, packed_f32))
    assert out_f32.shape == (batch, AP_SIZE)
    assert jnp.allclose(out_f32, ref, atol=1e-5, rtol=1e-5)

    # bf16 weight path (default; recommended on all gens): f32 accumulate,
    # looser tolerance.
    packed_bf16 = pack_params(params)
    out_bf16 = jax.block_until_ready(actor_forward(x, packed_bf16))
    assert out_bf16.shape == (batch, AP_SIZE)
    assert jnp.allclose(out_bf16, ref, atol=2e-2, rtol=2e-2)

    print("KERNEL_OK")
</pallas_src>

<mosaic_0001>
module attributes {stable_mosaic.version = 11 : i64} {
  func.func @actor_kernel(%arg0: i32, %arg1: memref<8x32xf32, #tpu.memory_space<vmem>>, %arg2: memref<32x512xf32, #tpu.memory_space<vmem>>, %arg3: memref<1x512xf32, #tpu.memory_space<vmem>>, %arg4: memref<512x256xf32, #tpu.memory_space<vmem>>, %arg5: memref<1x256xf32, #tpu.memory_space<vmem>>, %arg6: memref<256x640xf32, #tpu.memory_space<vmem>>, %arg7: memref<1x640xf32, #tpu.memory_space<vmem>>, %arg8: memref<640x128xf32, #tpu.memory_space<vmem>>, %arg9: memref<1x128xf32, #tpu.memory_space<vmem>>, %arg10: memref<8x128xf32, #tpu.memory_space<vmem>>) attributes {dimension_semantics = [#tpu.dimension_semantics<parallel>], iteration_bounds = array<i64: 1>, scalar_prefetch = 0 : i64, scratch_operands = 0 : i64, tpu.core_type = #tpu.core_type<tc>, window_params = [{transform_indices = @transform_0, window_bounds = array<i64: 8, 32>}, {pipeline_mode = #tpu.pipeline_mode<synchronous>, transform_indices = @transform_1, window_bounds = array<i64: 32, 512>}, {pipeline_mode = #tpu.pipeline_mode<synchronous>, transform_indices = @transform_2, window_bounds = array<i64: 1, 512>}, {pipeline_mode = #tpu.pipeline_mode<synchronous>, transform_indices = @transform_3, window_bounds = array<i64: 512, 256>}, {pipeline_mode = #tpu.pipeline_mode<synchronous>, transform_indices = @transform_4, window_bounds = array<i64: 1, 256>}, {pipeline_mode = #tpu.pipeline_mode<synchronous>, transform_indices = @transform_5, window_bounds = array<i64: 256, 640>}, {pipeline_mode = #tpu.pipeline_mode<synchronous>, transform_indices = @transform_6, window_bounds = array<i64: 1, 640>}, {pipeline_mode = #tpu.pipeline_mode<synchronous>, transform_indices = @transform_7, window_bounds = array<i64: 640, 128>}, {pipeline_mode = #tpu.pipeline_mode<synchronous>, transform_indices = @transform_8, window_bounds = array<i64: 1, 128>}, {transform_indices = @transform_9, window_bounds = array<i64: 8, 128>}]} {
    %c0 = arith.constant 0 : index
    %c0_0 = arith.constant 0 : index
    %0 = vector.load %arg1[%c0, %c0_0] : memref<8x32xf32, #tpu.memory_space<vmem>>, vector<8x32xf32>
    %c0_1 = arith.constant 0 : index
    %c0_2 = arith.constant 0 : index
    %1 = vector.load %arg2[%c0_1, %c0_2] : memref<32x512xf32, #tpu.memory_space<vmem>>, vector<32x512xf32>
    %cst = arith.constant dense<0.000000e+00> : vector<8x512xf32>
    %2 = tpu.matmul %0, %1, %cst {dimension_numbers = #tpu.dot_dimension_numbers<[1], [0], [0], [1], [0, 0, 1, 1], [], []>} : vector<8x32xf32>, vector<32x512xf32>, vector<8x512xf32> -> vector<8x512xf32>
    %c0_3 = arith.constant 0 : index
    %c0_4 = arith.constant 0 : index
    %3 = vector.load %arg3[%c0_3, %c0_4] : memref<1x512xf32, #tpu.memory_space<vmem>>, vector<1x512xf32>
    %4 = vector.broadcast %3 : vector<1x512xf32> to vector<8x512xf32>
    %5 = arith.addf %2, %4 : vector<8x512xf32>
    %cst_5 = arith.constant 0.000000e+00 : f32
    %6 = vector.broadcast %cst_5 : f32 to vector<8x512xf32>
    %7 = arith.maximumf %5, %6 : vector<8x512xf32>
    %c0_6 = arith.constant 0 : index
    %c0_7 = arith.constant 0 : index
    %8 = vector.load %arg4[%c0_6, %c0_7] : memref<512x256xf32, #tpu.memory_space<vmem>>, vector<512x256xf32>
    %cst_8 = arith.constant dense<0.000000e+00> : vector<8x256xf32>
    %9 = tpu.matmul %7, %8, %cst_8 {dimension_numbers = #tpu.dot_dimension_numbers<[1], [0], [0], [1], [0, 0, 1, 1], [], []>} : vector<8x512xf32>, vector<512x256xf32>, vector<8x256xf32> -> vector<8x256xf32>
    %c0_9 = arith.constant 0 : index
    %c0_10 = arith.constant 0 : index
    %10 = vector.load %arg5[%c0_9, %c0_10] : memref<1x256xf32, #tpu.memory_space<vmem>>, vector<1x256xf32>
    %11 = vector.broadcast %10 : vector<1x256xf32> to vector<8x256xf32>
    %12 = arith.addf %9, %11 : vector<8x256xf32>
    %cst_11 = arith.constant 0.000000e+00 : f32
    %13 = vector.broadcast %cst_11 : f32 to vector<8x256xf32>
    %14 = arith.maximumf %12, %13 : vector<8x256xf32>
    %c0_12 = arith.constant 0 : index
    %c0_13 = arith.constant 0 : index
    %15 = vector.load %arg6[%c0_12, %c0_13] : memref<256x640xf32, #tpu.memory_space<vmem>>, vector<256x640xf32>
    %cst_14 = arith.constant dense<0.000000e+00> : vector<8x640xf32>
    %16 = tpu.matmul %14, %15, %cst_14 {dimension_numbers = #tpu.dot_dimension_numbers<[1], [0], [0], [1], [0, 0, 1, 1], [], []>} : vector<8x256xf32>, vector<256x640xf32>, vector<8x640xf32> -> vector<8x640xf32>
    %c0_15 = arith.constant 0 : index
    %c0_16 = arith.constant 0 : index
    %17 = vector.load %arg7[%c0_15, %c0_16] : memref<1x640xf32, #tpu.memory_space<vmem>>, vector<1x640xf32>
    %18 = vector.broadcast %17 : vector<1x640xf32> to vector<8x640xf32>
    %19 = arith.addf %16, %18 : vector<8x640xf32>
    %cst_17 = arith.constant 0.000000e+00 : f32
    %20 = vector.broadcast %cst_17 : f32 to vector<8x640xf32>
    %21 = arith.maximumf %19, %20 : vector<8x640xf32>
    %c0_18 = arith.constant 0 : index
    %c0_19 = arith.constant 0 : index
    %22 = vector.load %arg8[%c0_18, %c0_19] : memref<640x128xf32, #tpu.memory_space<vmem>>, vector<640x128xf32>
    %cst_20 = arith.constant dense<0.000000e+00> : vector<8x128xf32>
    %23 = tpu.matmul %21, %22, %cst_20 {dimension_numbers = #tpu.dot_dimension_numbers<[1], [0], [0], [1], [0, 0, 1, 1], [], []>} : vector<8x640xf32>, vector<640x128xf32>, vector<8x128xf32> -> vector<8x128xf32>
    %c0_21 = arith.constant 0 : index
    %c0_22 = arith.constant 0 : index
    %24 = vector.load %arg9[%c0_21, %c0_22] : memref<1x128xf32, #tpu.memory_space<vmem>>, vector<1x128xf32>
    %25 = vector.broadcast %24 : vector<1x128xf32> to vector<8x128xf32>
    %26 = arith.addf %23, %25 : vector<8x128xf32>
    %27 = arith.negf %26 : vector<8x128xf32>
    %28 = math.exp %27 : vector<8x128xf32>
    %cst_23 = arith.constant 1.000000e+00 : f32
    %29 = vector.broadcast %cst_23 : f32 to vector<8x128xf32>
    %30 = arith.addf %29, %28 : vector<8x128xf32>
    %31 = arith.divf %29, %30 : vector<8x128xf32>
    %c0_24 = arith.constant 0 : index
    %c0_25 = arith.constant 0 : index
    %32 = vector.load %arg10[%c0_24, %c0_25] : memref<8x128xf32, #tpu.memory_space<vmem>>, vector<8x128xf32>
    tpu.vector_store %arg10[%c0_24, %c0_25], %31 {strides = array<i32>} : memref<8x128xf32, #tpu.memory_space<vmem>>, vector<8x128xf32>,
    return
  }
  func.func @transform_0(%arg0: i32) -> (i32, i32) {
    %c0_i32 = arith.constant 0 : i32
    %c0_i32_0 = arith.constant 0 : i32
    return %arg0, %c0_i32 : i32, i32
  }
  func.func @transform_1(%arg0: i32) -> (i32, i32) {
    %c0_i32 = arith.constant 0 : i32
    %c0_i32_0 = arith.constant 0 : i32
    %c0_i32_1 = arith.constant 0 : i32
    return %c0_i32, %c0_i32_0 : i32, i32
  }
  func.func @transform_2(%arg0: i32) -> (i32, i32) {
    %c0_i32 = arith.constant 0 : i32
    %c0_i32_0 = arith.constant 0 : i32
    %c0_i32_1 = arith.constant 0 : i32
    return %c0_i32, %c0_i32_0 : i32, i32
  }
  func.func @transform_3(%arg0: i32) -> (i32, i32) {
    %c0_i32 = arith.constant 0 : i32
    %c0_i32_0 = arith.constant 0 : i32
    %c0_i32_1 = arith.constant 0 : i32
    return %c0_i32, %c0_i32_0 : i32, i32
  }
  func.func @transform_4(%arg0: i32) -> (i32, i32) {
    %c0_i32 = arith.constant 0 : i32
    %c0_i32_0 = arith.constant 0 : i32
    %c0_i32_1 = arith.constant 0 : i32
    return %c0_i32, %c0_i32_0 : i32, i32
  }
  func.func @transform_5(%arg0: i32) -> (i32, i32) {
    %c0_i32 = arith.constant 0 : i32
    %c0_i32_0 = arith.constant 0 : i32
    %c0_i32_1 = arith.constant 0 : i32
    return %c0_i32, %c0_i32_0 : i32, i32
  }
  func.func @transform_6(%arg0: i32) -> (i32, i32) {
    %c0_i32 = arith.constant 0 : i32
    %c0_i32_0 = arith.constant 0 : i32
    %c0_i32_1 = arith.constant 0 : i32
    return %c0_i32, %c0_i32_0 : i32, i32
  }
  func.func @transform_7(%arg0: i32) -> (i32, i32) {
    %c0_i32 = arith.constant 0 : i32
    %c0_i32_0 = arith.constant 0 : i32
    %c0_i32_1 = arith.constant 0 : i32
    return %c0_i32, %c0_i32_0 : i32, i32
  }
  func.func @transform_8(%arg0: i32) -> (i32, i32) {
    %c0_i32 = arith.constant 0 : i32
    %c0_i32_0 = arith.constant 0 : i32
    %c0_i32_1 = arith.constant 0 : i32
    return %c0_i32, %c0_i32_0 : i32, i32
  }
  func.func @transform_9(%arg0: i32) -> (i32, i32) {
    %c0_i32 = arith.constant 0 : i32
    %c0_i32_0 = arith.constant 0 : i32
    return %arg0, %c0_i32 : i32, i32
  }
}

</mosaic_0001>

<llo_original>
// kernel: actor_forward.1
$region0: #{actor_forward.1}
  #allocation0 [shape = 'u32[]', space=smem, size = 0x4, offset = 0x4, fixed_abs, tag = 'smem constant byte address 0x4 - core index']
  #allocation1 [shape = 'u32[144,128]{1,0:T(1,128)}', space=vmem, size = 0x12000, scoped, tag = 'internal scratch']
  %s0 = inlined_call_operand.hbm [shape: f32[8,32], index: 0, kind: input, shape index: {}]
  %s1 = inlined_call_operand.hbm [shape: f32[32,512], index: 1, kind: input, shape index: {}]
  %s2 = inlined_call_operand.hbm [shape: f32[1,512], index: 2, kind: input, shape index: {}]
  %s3 = inlined_call_operand.hbm [shape: f32[512,256], index: 3, kind: input, shape index: {}]
  %s4 = inlined_call_operand.vmem [shape: f32[1,256], index: 4, kind: input, shape index: {}]
  %s5 = inlined_call_operand.hbm [shape: f32[256,640], index: 5, kind: input, shape index: {}]
  %s6 = inlined_call_operand.vmem [shape: f32[1,640], index: 6, kind: input, shape index: {}]
  %s7 = inlined_call_operand.hbm [shape: f32[640,128], index: 7, kind: input, shape index: {}]
  %s8 = inlined_call_operand.vmem [shape: f32[1,128], index: 8, kind: input, shape index: {}]
  %s9 = inlined_call_operand.hbm [shape: f32[8,128], index: 9, kind: output, shape index: {}]
  %s10 = sld [smem:[#allocation0]]
  $region70: #{actor_forward.1} parent=0
    _
  %s12 = ssub.s32 1, %s10
  %s13 = scalar_select 0, %s12, %s10
  $region1: #{actor_forward.1} parent=0
    #allocation2 [shape = 'u8[4096]{0}', space=vmem, size = 0x1000, scoped, tag = 'input window, operand 0, single buffered']
    #allocation3 [shape = 's32[1]{0}', space=sflag, size = 0x4, scoped, tag = 'scoped memory for actor_forward.1']
    #allocation4 [shape = 's32[1]{0}', space=sflag, size = 0x4, scoped, tag = 'scoped memory for actor_forward.1']
    #allocation5 [shape = 'u8[65536]{0}', space=vmem, size = 0x10000, scoped, tag = 'input window, operand 1, single buffered']
    #allocation6 [shape = 's32[1]{0}', space=sflag, size = 0x4, scoped, tag = 'scoped memory for actor_forward.1']
    #allocation7 [shape = 'u8[2048]{0}', space=vmem, size = 0x800, scoped, tag = 'input window, operand 2, single buffered']
    #allocation8 [shape = 'u8[524288]{0}', space=vmem, size = 0x80000, scoped, tag = 'input window, operand 3, single buffered']
    #allocation9 [shape = 's32[1]{0}', space=sflag, size = 0x4, scoped, tag = 'scoped memory for actor_forward.1']
    #allocation10 [shape = 'u8[655360]{0}', space=vmem, size = 0xa0000, scoped, tag = 'input window, operand 5, single buffered']
    #allocation11 [shape = 'u8[327680]{0}', space=vmem, size = 0x50000, scoped, tag = 'input window, operand 7, single buffered']
    #allocation12 [shape = 's32[1]{0}', space=sflag, size = 0x4, scoped, tag = 'scoped memory for actor_forward.1']
    #allocation13 [shape = 'u8[4096]{0}', space=vmem, size = 0x1000, scoped, tag = 'output window, operand 0, single buffered']
    %14 = vsyncpa [#allocation3], 0
    %15 = vsyncpa [#allocation6], 0
    %16 = vsyncpa [#allocation9], 0
    %17 = vsyncpa [#allocation12], 0
    %18 = vsyncpa [#allocation4], 0
    // Predicated region
    $region2: #{actor_forward.1} parent=1 // pred_check
      _
    $region3: #{actor_forward.1} parent=1 // pred_check_branch
      %20 = sbr.rel (0) target = $region5
    $region4: #{actor_forward.1} parent=1 // pred_region
      %s22 = ssub.s32 128, 128
      %23 = vsyncadd [#allocation3], %s22
      %s25 = sshll.u32 [#allocation2], 4
      %s26 = int_to_ptr.vmem [resolvable:$true] %s25
      %28 = dma.hbm_to_vmem [thread:$0]  %s0, 128, %s26, [#allocation3]
    $region5: #{actor_forward.1} parent=1 // pred_fallthru
      _
    // Predicated region
    $region6: #{actor_forward.1} parent=1 // pred_check
      _
    $region7: #{actor_forward.1} parent=1 // pred_check_branch
      %30 = sbr.rel (0) target = $region9
    $region8: #{actor_forward.1} parent=1 // pred_region
      %s32 = ssub.s32 2048, 2048
      %33 = vsyncadd [#allocation6], %s32
      %s34 = sshll.u32 [#allocation5], 4
      %s35 = int_to_ptr.vmem [resolvable:$true] %s34
      %40 = dma.hbm_to_vmem [thread:$0]  %s1, 2048, %s35, [#allocation6], 512, 512, 32
    $region9: #{actor_forward.1} parent=1 // pred_fallthru
      _
    // Predicated region
    $region10: #{actor_forward.1} parent=1 // pred_check
      _
    $region11: #{actor_forward.1} parent=1 // pred_check_branch
      %42 = sbr.rel (0) target = $region13
    $region12: #{actor_forward.1} parent=1 // pred_region
      %s44 = ssub.s32 64, 64
      %45 = vsyncadd [#allocation6], %s44
      %s47 = sshll.u32 [#allocation7], 4
      %s48 = int_to_ptr.vmem [resolvable:$true] %s47
      %50 = dma.hbm_to_vmem [thread:$0]  %s2, 64, %s48, [#allocation6]
    $region13: #{actor_forward.1} parent=1 // pred_fallthru
      _
    // Predicated region
    $region14: #{actor_forward.1} parent=1 // pred_check
      _
    $region15: #{actor_forward.1} parent=1 // pred_check_branch
      %52 = sbr.rel (0) target = $region17
    $region16: #{actor_forward.1} parent=1 // pred_region
      %s54 = ssub.s32 16384, 16384
      %55 = vsyncadd [#allocation9], %s54
      %s56 = sshll.u32 [#allocation8], 4
      %s57 = int_to_ptr.vmem [resolvable:$true] %s56
      %62 = dma.hbm_to_vmem [thread:$0]  %s3, 16384, %s57, [#allocation9], 256, 256, 16
    $region17: #{actor_forward.1} parent=1 // pred_fallthru
      _
    // Predicated region
    $region18: #{actor_forward.1} parent=1 // pred_check
      _
    $region19: #{actor_forward.1} parent=1 // pred_check_branch
      %64 = sbr.rel (0) target = $region21
    $region20: #{actor_forward.1} parent=1 // pred_region
      _
    $region21: #{actor_forward.1} parent=1 // pred_fallthru
      _
    // Predicated region
    $region22: #{actor_forward.1} parent=1 // pred_check
      _
    $region23: #{actor_forward.1} parent=1 // pred_check_branch
      %66 = sbr.rel (0) target = $region25
    $region24: #{actor_forward.1} parent=1 // pred_region
      %s68 = ssub.s32 20480, 20480
      %69 = vsyncadd [#allocation9], %s68
      %s70 = sshll.u32 [#allocation10], 4
      %s71 = int_to_ptr.vmem [resolvable:$true] %s70
      %76 = dma.hbm_to_vmem [thread:$0]  %s5, 20480, %s71, [#allocation9], 640, 640, 40
    $region25: #{actor_forward.1} parent=1 // pred_fallthru
      _
    // Predicated region
    $region26: #{actor_forward.1} parent=1 // pred_check
      _
    $region27: #{actor_forward.1} parent=1 // pred_check_branch
      %78 = sbr.rel (0) target = $region29
    $region28: #{actor_forward.1} parent=1 // pred_region
      _
    $region29: #{actor_forward.1} parent=1 // pred_fallthru
      _
    // Predicated region
    $region30: #{actor_forward.1} parent=1 // pred_check
      _
    $region31: #{actor_forward.1} parent=1 // pred_check_branch
      %80 = sbr.rel (0) target = $region33
    $region32: #{actor_forward.1} parent=1 // pred_region
      %s82 = ssub.s32 10240, 10240
      %83 = vsyncadd [#allocation12], %s82
      %s84 = sshll.u32 [#allocation11], 4
      %s85 = int_to_ptr.vmem [resolvable:$true] %s84
      %90 = dma.hbm_to_vmem [thread:$0]  %s7, 10240, %s85, [#allocation12], 128, 128, 8
    $region33: #{actor_forward.1} parent=1 // pred_fallthru
      _
    // Predicated region
    $region34: #{actor_forward.1} parent=1 // pred_check
      _
    $region35: #{actor_forward.1} parent=1 // pred_check_branch
      %92 = sbr.rel (0) target = $region37
    $region36: #{actor_forward.1} parent=1 // pred_region
      _
    $region37: #{actor_forward.1} parent=1 // pred_fallthru
      _
    // Predicated region
    $region38: #{actor_forward.1} parent=1 // pred_check
      _
    $region39: #{actor_forward.1} parent=1 // pred_check_branch
      %94 = sbr.rel (0) target = $region41
    $region40: #{actor_forward.1} parent=1 // pred_region
      %95 = dma.done [#allocation3], 128
    $region41: #{actor_forward.1} parent=1 // pred_fallthru
      _
    // Predicated region
    $region42: #{actor_forward.1} parent=1 // pred_check
      _
    $region43: #{actor_forward.1} parent=1 // pred_check_branch
      %97 = sbr.rel (0) target = $region45
    $region44: #{actor_forward.1} parent=1 // pred_region
      %98 = dma.done [#allocation6], 2048
    $region45: #{actor_forward.1} parent=1 // pred_fallthru
      _
    // Predicated region
    $region46: #{actor_forward.1} parent=1 // pred_check
      _
    $region47: #{actor_forward.1} parent=1 // pred_check_branch
      %100 = sbr.rel (0) target = $region49
    $region48: #{actor_forward.1} parent=1 // pred_region
      %101 = dma.done [#allocation6], 64
    $region49: #{actor_forward.1} parent=1 // pred_fallthru
      _
    // Predicated region
    $region50: #{actor_forward.1} parent=1 // pred_check
      _
    $region51: #{actor_forward.1} parent=1 // pred_check_branch
      %103 = sbr.rel (0) target = $region53
    $region52: #{actor_forward.1} parent=1 // pred_region
      %104 = dma.done [#allocation9], 16384
    $region53: #{actor_forward.1} parent=1 // pred_fallthru
      _
    // Predicated region
    $region54: #{actor_forward.1} parent=1 // pred_check
      _
    $region55: #{actor_forward.1} parent=1 // pred_check_branch
      %106 = sbr.rel (0) target = $region57
    $region56: #{actor_forward.1} parent=1 // pred_region
      %107 = dma.done [#allocation9], 20480
    $region57: #{actor_forward.1} parent=1 // pred_fallthru
      _
    // Predicated region
    $region58: #{actor_forward.1} parent=1 // pred_check
      _
    $region59: #{actor_forward.1} parent=1 // pred_check_branch
      %109 = sbr.rel (0) target = $region61
    $region60: #{actor_forward.1} parent=1 // pred_region
      %110 = dma.done [#allocation12], 10240
    $region61: #{actor_forward.1} parent=1 // pred_fallthru
      _
    %v111 = vld [vmem:[#allocation2] sm:$0xff]
    %v112 = vld [vmem:[#allocation5] sm:$0xff]
    %v113 = vld [vmem:[#allocation5 + $0x8] sm:$0xff]
    %v114 = vld [vmem:[#allocation5 + $0x10] sm:$0xff]
    %v115 = vld [vmem:[#allocation5 + $0x18] sm:$0xff]
    %v116 = vld [vmem:[#allocation5 + $0x20] sm:$0xff]
    %v117 = vld [vmem:[#allocation5 + $0x28] sm:$0xff]
    %v118 = vld [vmem:[#allocation5 + $0x30] sm:$0xff]
    %v119 = vld [vmem:[#allocation5 + $0x38] sm:$0xff]
    %v120 = vld [vmem:[#allocation5 + $0x40] sm:$0xff]
    %v121 = vld [vmem:[#allocation5 + $0x48] sm:$0xff]
    %v122 = vld [vmem:[#allocation5 + $0x50] sm:$0xff]
    %v123 = vld [vmem:[#allocation5 + $0x58] sm:$0xff]
    %v124 = vld [vmem:[#allocation5 + $0x60] sm:$0xff]
    %v125 = vld [vmem:[#allocation5 + $0x68] sm:$0xff]
    %v126 = vld [vmem:[#allocation5 + $0x70] sm:$0xff]
    %v127 = vld [vmem:[#allocation5 + $0x78] sm:$0xff]
    %v128 = vld [vmem:[#allocation7] sm:$0xf]
    %v130 = vlaneseq
    %v131 = vshrl.u32 %v130, 7
    %v132 = vsub.s32 0, %v131
    %v133 = vrot.slane %v128, %v132
    %v134 = vlaneseq
    %v135 = vshrl.u32 %v134, 7
    %v136 = vsub.s32 1, %v135
    %v137 = vrot.slane %v128, %v136
    %v138 = vlaneseq
    %v139 = vshrl.u32 %v138, 7
    %v140 = vsub.s32 2, %v139
    %v141 = vrot.slane %v128, %v140
    %v142 = vlaneseq
    %v143 = vshrl.u32 %v142, 7
    %v144 = vsub.s32 3, %v143
    %v145 = vrot.slane %v128, %v144
    %vm150 = vcmask 261120
    %v152 = vsel %vm150, %v111, 0
    %154 = vmatprep.subr.mxu0 0.0
    %155 = vmatpush1.msra.mxu0 0.0
    %156 = vmatprep.subr.mxu0 0.0
    %157 = vmatpush1.msra.mxu0 0.0
    %158 = vmatprep.subr.mxu0 0.0
    %159 = vmatpush1.msra.mxu0 0.0
    %160 = vmatprep.subr.mxu0 0.0
    %161 = vmatpush1.msra.mxu0 0.0
    %162 = vmatprep.subr.mxu0 0.0
    %163 = vmatpush1.msra.mxu0 0.0
    %164 = vmatprep.subr.mxu0 0.0
    %165 = vmatpush1.msra.mxu0 0.0
    %166 = vmatprep.subr.mxu0 0.0
    %167 = vmatpush1.msra.mxu0 0.0
    %168 = vmatprep.subr.mxu0 0.0
    %169 = vmatpush1.msra.mxu0 0.0
    %170 = vmatprep.subr.mxu0 0.0
    %171 = vmatpush1.msra.mxu0 0.0
    %172 = vmatprep.subr.mxu0 0.0
    %173 = vmatpush1.msra.mxu0 0.0
    %174 = vmatprep.subr.mxu0 0.0
    %175 = vmatpush1.msra.mxu0 0.0
    %176 = vmatprep.subr.mxu0 0.0
    %177 = vmatpush1.msra.mxu0 0.0
    %178 = vmatprep.subr.mxu0 %v125
    %179 = vmatpush1.msra.mxu0 %v124
    %180 = vmatprep.subr.mxu0 %v121
    %181 = vmatpush1.msra.mxu0 %v120
    %182 = vmatprep.subr.mxu0 %v117
    %183 = vmatpush1.msra.mxu0 %v116
    %184 = vmatprep.subr.mxu0 %v113
    %185 = vmatpush1.msra.mxu0 %v112
    %186 = vmatprep.subr.mxu0 0.0
    %187 = vmatpush2.msra.mxu0 0.0
    %188 = vmatprep.subr.mxu0 0.0
    %189 = vmatpush2.msra.mxu0 0.0
    %190 = vmatprep.subr.mxu0 0.0
    %191 = vmatpush2.msra.mxu0 0.0
    %192 = vmatprep.subr.mxu0 0.0
    %193 = vmatpush2.msra.mxu0 0.0
    %194 = vmatprep.subr.mxu0 0.0
    %195 = vmatpush2.msra.mxu0 0.0
    %196 = vmatprep.subr.mxu0 0.0
    %197 = vmatpush2.msra.mxu0 0.0
    %198 = vmatprep.subr.mxu0 0.0
    %199 = vmatpush2.msra.mxu0 0.0
    %200 = vmatprep.subr.mxu0 0.0
    %201 = vmatpush2.msra.mxu0 0.0
    %202 = vmatprep.subr.mxu0 0.0
    %203 = vmatpush2.msra.mxu0 0.0
    %204 = vmatprep.subr.mxu0 0.0
    %205 = vmatpush2.msra.mxu0 0.0
    %206 = vmatprep.subr.mxu0 0.0
    %207 = vmatpush2.msra.mxu0 0.0
    %208 = vmatprep.subr.mxu0 0.0
    %209 = vmatpush2.msra.mxu0 0.0
    %210 = vmatprep.subr.mxu0 0.0
    %211 = vmatpush2.msra.mxu0 0.0
    %212 = vmatprep.subr.mxu0 0.0
    %213 = vmatpush2.msra.mxu0 0.0
    %214 = vmatprep.subr.mxu0 0.0
    %215 = vmatpush2.msra.mxu0 0.0
    %216 = vmatprep.subr.mxu0 0.0
    %217 = vmatpush2.msra.mxu0 0.0
    %218 = vmatprep.mubr.f32.mxu0 0.0
    %219 = vmatmul.mubr.f32.gmra.mxu0 %v152
    %v220 = vpop.f32.mrf.mxu0
    %v221 = vadd.f32 %v133, %v220
    %v222 = vpop.f32.mrf.mxu0
    %v223 = vadd.f32 %v137, %v222
    %224 = vdwg.mxu0
    %225 = vmatprep.subr.mxu0 0.0
    %226 = vmatpush1.msra.mxu0 0.0
    %227 = vmatprep.subr.mxu0 0.0
    %228 = vmatpush1.msra.mxu0 0.0
    %229 = vmatprep.subr.mxu0 0.0
    %230 = vmatpush1.msra.mxu0 0.0
    %231 = vmatprep.subr.mxu0 0.0
    %232 = vmatpush1.msra.mxu0 0.0
    %233 = vmatprep.subr.mxu0 0.0
    %234 = vmatpush1.msra.mxu0 0.0
    %235 = vmatprep.subr.mxu0 0.0
    %236 = vmatpush1.msra.mxu0 0.0
    %237 = vmatprep.subr.mxu0 0.0
    %238 = vmatpush1.msra.mxu0 0.0
    %239 = vmatprep.subr.mxu0 0.0
    %240 = vmatpush1.msra.mxu0 0.0
    %241 = vmatprep.subr.mxu0 0.0
    %242 = vmatpush1.msra.mxu0 0.0
    %243 = vmatprep.subr.mxu0 0.0
    %244 = vmatpush1.msra.mxu0 0.0
    %245 = vmatprep.subr.mxu0 0.0
    %246 = vmatpush1.msra.mxu0 0.0
    %247 = vmatprep.subr.mxu0 0.0
    %248 = vmatpush1.msra.mxu0 0.0
    %249 = vmatprep.subr.mxu0 %v127
    %250 = vmatpush1.msra.mxu0 %v126
    %251 = vmatprep.subr.mxu0 %v123
    %252 = vmatpush1.msra.mxu0 %v122
    %253 = vmatprep.subr.mxu0 %v119
    %254 = vmatpush1.msra.mxu0 %v118
    %255 = vmatprep.subr.mxu0 %v115
    %256 = vmatpush1.msra.mxu0 %v114
    %257 = vmatprep.subr.mxu0 0.0
    %258 = vmatpush2.msra.mxu0 0.0
    %259 = vmatprep.subr.mxu0 0.0
    %260 = vmatpush2.msra.mxu0 0.0
    %261 = vmatprep.subr.mxu0 0.0
    %262 = vmatpush2.msra.mxu0 0.0
    %263 = vmatprep.subr.mxu0 0.0
    %264 = vmatpush2.msra.mxu0 0.0
    %265 = vmatprep.subr.mxu0 0.0
    %266 = vmatpush2.msra.mxu0 0.0
    %267 = vmatprep.subr.mxu0 0.0
    %268 = vmatpush2.msra.mxu0 0.0
    %269 = vmatprep.subr.mxu0 0.0
    %270 = vmatpush2.msra.mxu0 0.0
    %271 = vmatprep.subr.mxu0 0.0
    %272 = vmatpush2.msra.mxu0 0.0
    %273 = vmatprep.subr.mxu0 0.0
    %274 = vmatpush2.msra.mxu0 0.0
    %275 = vmatprep.subr.mxu0 0.0
    %276 = vmatpush2.msra.mxu0 0.0
    %277 = vmatprep.subr.mxu0 0.0
    %278 = vmatpush2.msra.mxu0 0.0
    %279 = vmatprep.subr.mxu0 0.0
    %280 = vmatpush2.msra.mxu0 0.0
    %281 = vmatprep.subr.mxu0 0.0
    %282 = vmatpush2.msra.mxu0 0.0
    %283 = vmatprep.subr.mxu0 0.0
    %284 = vmatpush2.msra.mxu0 0.0
    %285 = vmatprep.subr.mxu0 0.0
    %286 = vmatpush2.msra.mxu0 0.0
    %287 = vmatprep.subr.mxu0 0.0
    %288 = vmatpush2.msra.mxu0 0.0
    %289 = vmatprep.mubr.f32.mxu0 0.0
    %290 = vmatmul.mubr.f32.gmra.mxu0 %v152
    %v291 = vpop.f32.mrf.mxu0
    %v292 = vadd.f32 %v141, %v291
    %v293 = vpop.f32.mrf.mxu0
    %v294 = vadd.f32 %v145, %v293
    %295 = vdwg.mxu0
    %v296 = vmax.f32 %v221, 0.0
    %v297 = vmax.f32 %v223, 0.0
    %v298 = vmax.f32 %v292, 0.0
    %v299 = vmax.f32 %v294, 0.0
    %v300 = vld [vmem:[#allocation8] sm:$0xff]
    %v301 = vld [vmem:[#allocation8 + $0x8] sm:$0xff]
    %v302 = vld [vmem:[#allocation8 + $0x10] sm:$0xff]
    %v303 = vld [vmem:[#allocation8 + $0x18] sm:$0xff]
    %v304 = vld [vmem:[#allocation8 + $0x20] sm:$0xff]
    %v305 = vld [vmem:[#allocation8 + $0x28] sm:$0xff]
    %v306 = vld [vmem:[#allocation8 + $0x30] sm:$0xff]
    %v307 = vld [vmem:[#allocation8 + $0x38] sm:$0xff]
    %v308 = vld [vmem:[#allocation8 + $0x40] sm:$0xff]
    %v309 = vld [vmem:[#allocation8 + $0x48] sm:$0xff]
    %v310 = vld [vmem:[#allocation8 + $0x50] sm:$0xff]
    %v311 = vld [vmem:[#allocation8 + $0x58] sm:$0xff]
    %v312 = vld [vmem:[#allocation8 + $0x60] sm:$0xff]
    %v313 = vld [vmem:[#allocation8 + $0x68] sm:$0xff]
    %v314 = vld [vmem:[#allocation8 + $0x70] sm:$0xff]
    %v315 = vld [vmem:[#allocation8 + $0x78] sm:$0xff]
    %v316 = vld [vmem:[#allocation8 + $0x80] sm:$0xff]
    %v317 = vld [vmem:[#allocation8 + $0x88] sm:$0xff]
    %v318 = vld [vmem:[#allocation8 + $0x90] sm:$0xff]
    %v319 = vld [vmem:[#allocation8 + $0x98] sm:$0xff]
    %v320 = vld [vmem:[#allocation8 + $0xa0] sm:$0xff]
    %v321 = vld [vmem:[#allocation8 + $0xa8] sm:$0xff]
    %v322 = vld [vmem:[#allocation8 + $0xb0] sm:$0xff]
    %v323 = vld [vmem:[#allocation8 + $0xb8] sm:$0xff]
    %v324 = vld [vmem:[#allocation8 + $0xc0] sm:$0xff]
    %v325 = vld [vmem:[#allocation8 + $0xc8] sm:$0xff]
    %v326 = vld [vmem:[#allocation8 + $0xd0] sm:$0xff]
    %v327 = vld [vmem:[#allocation8 + $0xd8] sm:$0xff]
    %v328 = vld [vmem:[#allocation8 + $0xe0] sm:$0xff]
    %v329 = vld [vmem:[#allocation8 + $0xe8] sm:$0xff]
    %v330 = vld [vmem:[#allocation8 + $0xf0] sm:$0xff]
    %v331 = vld [vmem:[#allocation8 + $0xf8] sm:$0xff]
    %v332 = vld [vmem:[#allocation8 + $0x100] sm:$0xff]
    %v333 = vld [vmem:[#allocation8 + $0x108] sm:$0xff]
    %v334 = vld [vmem:[#allocation8 + $0x110] sm:$0xff]
    %v335 = vld [vmem:[#allocation8 + $0x118] sm:$0xff]
    %v336 = vld [vmem:[#allocation8 + $0x120] sm:$0xff]
    %v337 = vld [vmem:[#allocation8 + $0x128] sm:$0xff]
    %v338 = vld [vmem:[#allocation8 + $0x130] sm:$0xff]
    %v339 = vld [vmem:[#allocation8 + $0x138] sm:$0xff]
    %v340 = vld [vmem:[#allocation8 + $0x140] sm:$0xff]
    %v341 = vld [vmem:[#allocation8 + $0x148] sm:$0xff]
    %v342 = vld [vmem:[#allocation8 + $0x150] sm:$0xff]
    %v343 = vld [vmem:[#allocation8 + $0x158] sm:$0xff]
    %v344 = vld [vmem:[#allocation8 + $0x160] sm:$0xff]
    %v345 = vld [vmem:[#allocation8 + $0x168] sm:$0xff]
    %v346 = vld [vmem:[#allocation8 + $0x170] sm:$0xff]
    %v347 = vld [vmem:[#allocation8 + $0x178] sm:$0xff]
    %v348 = vld [vmem:[#allocation8 + $0x180] sm:$0xff]
    %v349 = vld [vmem:[#allocation8 + $0x188] sm:$0xff]
    %v350 = vld [vmem:[#allocation8 + $0x190] sm:$0xff]
    %v351 = vld [vmem:[#allocation8 + $0x198] sm:$0xff]
    %v352 = vld [vmem:[#allocation8 + $0x1a0] sm:$0xff]
    %v353 = vld [vmem:[#allocation8 + $0x1a8] sm:$0xff]
    %v354 = vld [vmem:[#allocation8 + $0x1b0] sm:$0xff]
    %v355 = vld [vmem:[#allocation8 + $0x1b8] sm:$0xff]
    %v356 = vld [vmem:[#allocation8 + $0x1c0] sm:$0xff]
    %v357 = vld [vmem:[#allocation8 + $0x1c8] sm:$0xff]
    %v358 = vld [vmem:[#allocation8 + $0x1d0] sm:$0xff]
    %v359 = vld [vmem:[#allocation8 + $0x1d8] sm:$0xff]
    %v360 = vld [vmem:[#allocation8 + $0x1e0] sm:$0xff]
    %v361 = vld [vmem:[#allocation8 + $0x1e8] sm:$0xff]
    %v362 = vld [vmem:[#allocation8 + $0x1f0] sm:$0xff]
    %v363 = vld [vmem:[#allocation8 + $0x1f8] sm:$0xff]
    %v364 = vld [vmem:[#allocation8 + $0x200] sm:$0xff]
    %v365 = vld [vmem:[#allocation8 + $0x208] sm:$0xff]
    %v366 = vld [vmem:[#allocation8 + $0x210] sm:$0xff]
    %v367 = vld [vmem:[#allocation8 + $0x218] sm:$0xff]
    %v368 = vld [vmem:[#allocation8 + $0x220] sm:$0xff]
    %v369 = vld [vmem:[#allocation8 + $0x228] sm:$0xff]
    %v370 = vld [vmem:[#allocation8 + $0x230] sm:$0xff]
    %v371 = vld [vmem:[#allocation8 + $0x238] sm:$0xff]
    %v372 = vld [vmem:[#allocation8 + $0x240] sm:$0xff]
    %v373 = vld [vmem:[#allocation8 + $0x248] sm:$0xff]
    %v374 = vld [vmem:[#allocation8 + $0x250] sm:$0xff]
    %v375 = vld [vmem:[#allocation8 + $0x258] sm:$0xff]
    %v376 = vld [vmem:[#allocation8 + $0x260] sm:$0xff]
    %v377 = vld [vmem:[#allocation8 + $0x268] sm:$0xff]
    %v378 = vld [vmem:[#allocation8 + $0x270] sm:$0xff]
    %v379 = vld [vmem:[#allocation8 + $0x278] sm:$0xff]
    %v380 = vld [vmem:[#allocation8 + $0x280] sm:$0xff]
    %v381 = vld [vmem:[#allocation8 + $0x288] sm:$0xff]
    %v382 = vld [vmem:[#allocation8 + $0x290] sm:$0xff]
    %v383 = vld [vmem:[#allocation8 + $0x298] sm:$0xff]
    %v384 = vld [vmem:[#allocation8 + $0x2a0] sm:$0xff]
    %v385 = vld [vmem:[#allocation8 + $0x2a8] sm:$0xff]
    %v386 = vld [vmem:[#allocation8 + $0x2b0] sm:$0xff]
    %v387 = vld [vmem:[#allocation8 + $0x2b8] sm:$0xff]
    %v388 = vld [vmem:[#allocation8 + $0x2c0] sm:$0xff]
    %v389 = vld [vmem:[#allocation8 + $0x2c8] sm:$0xff]
    %v390 = vld [vmem:[#allocation8 + $0x2d0] sm:$0xff]
    %v391 = vld [vmem:[#allocation8 + $0x2d8] sm:$0xff]
    %v392 = vld [vmem:[#allocation8 + $0x2e0] sm:$0xff]
    %v393 = vld [vmem:[#allocation8 + $0x2e8] sm:$0xff]
    %v394 = vld [vmem:[#allocation8 + $0x2f0] sm:$0xff]
    %v395 = vld [vmem:[#allocation8 + $0x2f8] sm:$0xff]
    %v396 = vld [vmem:[#allocation8 + $0x300] sm:$0xff]
    %v397 = vld [vmem:[#allocation8 + $0x308] sm:$0xff]
    %v398 = vld [vmem:[#allocation8 + $0x310] sm:$0xff]
    %v399 = vld [vmem:[#allocation8 + $0x318] sm:$0xff]
    %v400 = vld [vmem:[#allocation8 + $0x320] sm:$0xff]
    %v401 = vld [vmem:[#allocation8 + $0x328] sm:$0xff]
    %v402 = vld [vmem:[#allocation8 + $0x330] sm:$0xff]
    %v403 = vld [vmem:[#allocation8 + $0x338] sm:$0xff]
    %v404 = vld [vmem:[#allocation8 + $0x340] sm:$0xff]
    %v405 = vld [vmem:[#allocation8 + $0x348] sm:$0xff]
    %v406 = vld [vmem:[#allocation8 + $0x350] sm:$0xff]
    %v407 = vld [vmem:[#allocation8 + $0x358] sm:$0xff]
    %v408 = vld [vmem:[#allocation8 + $0x360] sm:$0xff]
    %v409 = vld [vmem:[#allocation8 + $0x368] sm:$0xff]
    %v410 = vld [vmem:[#allocation8 + $0x370] sm:$0xff]
    %v411 = vld [vmem:[#allocation8 + $0x378] sm:$0xff]
    %v412 = vld [vmem:[#allocation8 + $0x380] sm:$0xff]
    %v413 = vld [vmem:[#allocation8 + $0x388] sm:$0xff]
    %v414 = vld [vmem:[#allocation8 + $0x390] sm:$0xff]
    %v415 = vld [vmem:[#allocation8 + $0x398] sm:$0xff]
    %v416 = vld [vmem:[#allocation8 + $0x3a0] sm:$0xff]
    %v417 = vld [vmem:[#allocation8 + $0x3a8] sm:$0xff]
    %v418 = vld [vmem:[#allocation8 + $0x3b0] sm:$0xff]
    %v419 = vld [vmem:[#allocation8 + $0x3b8] sm:$0xff]
    %v420 = vld [vmem:[#allocation8 + $0x3c0] sm:$0xff]
    %v421 = vld [vmem:[#allocation8 + $0x3c8] sm:$0xff]
    %v422 = vld [vmem:[#allocation8 + $0x3d0] sm:$0xff]
    %v423 = vld [vmem:[#allocation8 + $0x3d8] sm:$0xff]
    %v424 = vld [vmem:[#allocation8 + $0x3e0] sm:$0xff]
    %v425 = vld [vmem:[#allocation8 + $0x3e8] sm:$0xff]
    %v426 = vld [vmem:[#allocation8 + $0x3f0] sm:$0xff]
    %v427 = vld [vmem:[#allocation8 + $0x3f8] sm:$0xff]
    %v428 = vld [vmem:[%s4] sm:$0x3]
    %v430 = vlaneseq
    %v431 = vshrl.u32 %v430, 7
    %v432 = vsub.s32 0, %v431
    %v433 = vrot.slane %v428, %v432
    %v434 = vlaneseq
    %v435 = vshrl.u32 %v434, 7
    %v436 = vsub.s32 1, %v435
    %v437 = vrot.slane %v428, %v436
    %440 = vmatprep.subr.mxu0 %v331
    %441 = vmatpush1.msra.mxu0 %v330
    %442 = vmatprep.subr.mxu0 %v329
    %443 = vmatpush1.msra.mxu0 %v328
    %444 = vmatprep.subr.mxu0 %v327
    %445 = vmatpush1.msra.mxu0 %v326
    %446 = vmatprep.subr.mxu0 %v325
    %447 = vmatpush1.msra.mxu0 %v324
    %448 = vmatprep.subr.mxu0 %v323
    %449 = vmatpush1.msra.mxu0 %v322
    %450 = vmatprep.subr.mxu0 %v321
    %451 = vmatpush1.msra.mxu0 %v320
    %452 = vmatprep.subr.mxu0 %v319
    %453 = vmatpush1.msra.mxu0 %v318
    %454 = vmatprep.subr.mxu0 %v317
    %455 = vmatpush1.msra.mxu0 %v316
    %456 = vmatprep.subr.mxu0 %v315
    %457 = vmatpush1.msra.mxu0 %v314
    %458 = vmatprep.subr.mxu0 %v313
    %459 = vmatpush1.msra.mxu0 %v312
    %460 = vmatprep.subr.mxu0 %v311
    %461 = vmatpush1.msra.mxu0 %v310
    %462 = vmatprep.subr.mxu0 %v309
    %463 = vmatpush1.msra.mxu0 %v308
    %464 = vmatprep.subr.mxu0 %v307
    %465 = vmatpush1.msra.mxu0 %v306
    %466 = vmatprep.subr.mxu0 %v305
    %467 = vmatpush1.msra.mxu0 %v304
    %468 = vmatprep.subr.mxu0 %v303
    %469 = vmatpush1.msra.mxu0 %v302
    %470 = vmatprep.subr.mxu0 %v301
    %471 = vmatpush1.msra.mxu0 %v300
    %472 = vmatprep.subr.mxu0 %v363
    %473 = vmatpush2.msra.mxu0 %v362
    %474 = vmatprep.subr.mxu0 %v361
    %475 = vmatpush2.msra.mxu0 %v360
    %476 = vmatprep.subr.mxu0 %v359
    %477 = vmatpush2.msra.mxu0 %v358
    %478 = vmatprep.subr.mxu0 %v357
    %479 = vmatpush2.msra.mxu0 %v356
    %480 = vmatprep.subr.mxu0 %v355
    %481 = vmatpush2.msra.mxu0 %v354
    %482 = vmatprep.subr.mxu0 %v353
    %483 = vmatpush2.msra.mxu0 %v352
    %484 = vmatprep.subr.mxu0 %v351
    %485 = vmatpush2.msra.mxu0 %v350
    %486 = vmatprep.subr.mxu0 %v349
    %487 = vmatpush2.msra.mxu0 %v348
    %488 = vmatprep.subr.mxu0 %v347
    %489 = vmatpush2.msra.mxu0 %v346
    %490 = vmatprep.subr.mxu0 %v345
    %491 = vmatpush2.msra.mxu0 %v344
    %492 = vmatprep.subr.mxu0 %v343
    %493 = vmatpush2.msra.mxu0 %v342
    %494 = vmatprep.subr.mxu0 %v341
    %495 = vmatpush2.msra.mxu0 %v340
    %496 = vmatprep.subr.mxu0 %v339
    %497 = vmatpush2.msra.mxu0 %v338
    %498 = vmatprep.subr.mxu0 %v337
    %499 = vmatpush2.msra.mxu0 %v336
    %500 = vmatprep.subr.mxu0 %v335
    %501 = vmatpush2.msra.mxu0 %v334
    %502 = vmatprep.subr.mxu0 %v333
    %503 = vmatpush2.msra.mxu0 %v332
    %504 = vmatprep.mubr.f32.mxu0 %v297
    %505 = vmatmul.mubr.f32.gmra.mxu0 %v296
    %v506 = vpop.f32.mrf.mxu0
    %v507 = vadd.f32 %v433, %v506
    %v508 = vpop.f32.mrf.mxu0
    %v509 = vadd.f32 %v437, %v508
    %510 = vdwg.mxu0
    %511 = vmatprep.subr.mxu0 %v395
    %512 = vmatpush1.msra.mxu0 %v394
    %513 = vmatprep.subr.mxu0 %v393
    %514 = vmatpush1.msra.mxu0 %v392
    %515 = vmatprep.subr.mxu0 %v391
    %516 = vmatpush1.msra.mxu0 %v390
    %517 = vmatprep.subr.mxu0 %v389
    %518 = vmatpush1.msra.mxu0 %v388
    %519 = vmatprep.subr.mxu0 %v387
    %520 = vmatpush1.msra.mxu0 %v386
    %521 = vmatprep.subr.mxu0 %v385
    %522 = vmatpush1.msra.mxu0 %v384
    %523 = vmatprep.subr.mxu0 %v383
    %524 = vmatpush1.msra.mxu0 %v382
    %525 = vmatprep.subr.mxu0 %v381
    %526 = vmatpush1.msra.mxu0 %v380
    %527 = vmatprep.subr.mxu0 %v379
    %528 = vmatpush1.msra.mxu0 %v378
    %529 = vmatprep.subr.mxu0 %v377
    %530 = vmatpush1.msra.mxu0 %v376
    %531 = vmatprep.subr.mxu0 %v375
    %532 = vmatpush1.msra.mxu0 %v374
    %533 = vmatprep.subr.mxu0 %v373
    %534 = vmatpush1.msra.mxu0 %v372
    %535 = vmatprep.subr.mxu0 %v371
    %536 = vmatpush1.msra.mxu0 %v370
    %537 = vmatprep.subr.mxu0 %v369
    %538 = vmatpush1.msra.mxu0 %v368
    %539 = vmatprep.subr.mxu0 %v367
    %540 = vmatpush1.msra.mxu0 %v366
    %541 = vmatprep.subr.mxu0 %v365
    %542 = vmatpush1.msra.mxu0 %v364
    %543 = vmatprep.subr.mxu0 %v427
    %544 = vmatpush2.msra.mxu0 %v426
    %545 = vmatprep.subr.mxu0 %v425
    %546 = vmatpush2.msra.mxu0 %v424
    %547 = vmatprep.subr.mxu0 %v423
    %548 = vmatpush2.msra.mxu0 %v422
    %549 = vmatprep.subr.mxu0 %v421
    %550 = vmatpush2.msra.mxu0 %v420
    %551 = vmatprep.subr.mxu0 %v419
    %552 = vmatpush2.msra.mxu0 %v418
    %553 = vmatprep.subr.mxu0 %v417
    %554 = vmatpush2.msra.mxu0 %v416
    %555 = vmatprep.subr.mxu0 %v415
    %556 = vmatpush2.msra.mxu0 %v414
    %557 = vmatprep.subr.mxu0 %v413
    %558 = vmatpush2.msra.mxu0 %v412
    %559 = vmatprep.subr.mxu0 %v411
    %560 = vmatpush2.msra.mxu0 %v410
    %561 = vmatprep.subr.mxu0 %v409
    %562 = vmatpush2.msra.mxu0 %v408
    %563 = vmatprep.subr.mxu0 %v407
    %564 = vmatpush2.msra.mxu0 %v406
    %565 = vmatprep.subr.mxu0 %v405
    %566 = vmatpush2.msra.mxu0 %v404
    %567 = vmatprep.subr.mxu0 %v403
    %568 = vmatpush2.msra.mxu0 %v402
    %569 = vmatprep.subr.mxu0 %v401
    %570 = vmatpush2.msra.mxu0 %v400
    %571 = vmatprep.subr.mxu0 %v399
    %572 = vmatpush2.msra.mxu0 %v398
    %573 = vmatprep.subr.mxu0 %v397
    %574 = vmatpush2.msra.mxu0 %v396
    %575 = vmatprep.mubr.f32.mxu0 %v299
    %576 = vmatmul.mubr.f32.gmra.mxu0 %v298
    %v577 = vpop.f32.mrf.mxu0
    %v578 = vadd.f32 %v507, %v577
    %v579 = vpop.f32.mrf.mxu0
    %v580 = vadd.f32 %v509, %v579
    %581 = vdwg.mxu0
    %v582 = vmax.f32 %v578, 0.0
    %v583 = vmax.f32 %v580, 0.0
    %v584 = vld [vmem:[#allocation10] sm:$0xff]
    %v585 = vld [vmem:[#allocation10 + $0x8] sm:$0xff]
    %v586 = vld [vmem:[#allocation10 + $0x10] sm:$0xff]
    %v587 = vld [vmem:[#allocation10 + $0x18] sm:$0xff]
    %v588 = vld [vmem:[#allocation10 + $0x20] sm:$0xff]
    %v589 = vld [vmem:[#allocation10 + $0x28] sm:$0xff]
    %v590 = vld [vmem:[#allocation10 + $0x30] sm:$0xff]
    %v591 = vld [vmem:[#allocation10 + $0x38] sm:$0xff]
    %v592 = vld [vmem:[#allocation10 + $0x40] sm:$0xff]
    %v593 = vld [vmem:[#allocation10 + $0x48] sm:$0xff]
    %v594 = vld [vmem:[#allocation10 + $0x50] sm:$0xff]
    %v595 = vld [vmem:[#allocation10 + $0x58] sm:$0xff]
    %v596 = vld [vmem:[#allocation10 + $0x60] sm:$0xff]
    %v597 = vld [vmem:[#allocation10 + $0x68] sm:$0xff]
    %v598 = vld [vmem:[#allocation10 + $0x70] sm:$0xff]
    %v599 = vld [vmem:[#allocation10 + $0x78] sm:$0xff]
    %v600 = vld [vmem:[#allocation10 + $0x80] sm:$0xff]
    %v601 = vld [vmem:[#allocation10 + $0x88] sm:$0xff]
    %v602 = vld [vmem:[#allocation10 + $0x90] sm:$0xff]
    %v603 = vld [vmem:[#allocation10 + $0x98] sm:$0xff]
    %v604 = vld [vmem:[#allocation10 + $0xa0] sm:$0xff]
    %v605 = vld [vmem:[#allocation10 + $0xa8] sm:$0xff]
    %v606 = vld [vmem:[#allocation10 + $0xb0] sm:$0xff]
    %v607 = vld [vmem:[#allocation10 + $0xb8] sm:$0xff]
    %v608 = vld [vmem:[#allocation10 + $0xc0] sm:$0xff]
    %v609 = vld [vmem:[#allocation10 + $0xc8] sm:$0xff]
    %v610 = vld [vmem:[#allocation10 + $0xd0] sm:$0xff]
    %v611 = vld [vmem:[#allocation10 + $0xd8] sm:$0xff]
    %v612 = vld [vmem:[#allocation10 + $0xe0] sm:$0xff]
    %v613 = vld [vmem:[#allocation10 + $0xe8] sm:$0xff]
    %v614 = vld [vmem:[#allocation10 + $0xf0] sm:$0xff]
    %v615 = vld [vmem:[#allocation10 + $0xf8] sm:$0xff]
    %v616 = vld [vmem:[#allocation10 + $0x100] sm:$0xff]
    %v617 = vld [vmem:[#allocation10 + $0x108] sm:$0xff]
    %v618 = vld [vmem:[#allocation10 + $0x110] sm:$0xff]
    %v619 = vld [vmem:[#allocation10 + $0x118] sm:$0xff]
    %v620 = vld [vmem:[#allocation10 + $0x120] sm:$0xff]
    %v621 = vld [vmem:[#allocation10 + $0x128] sm:$0xff]
    %v622 = vld [vmem:[#allocation10 + $0x130] sm:$0xff]
    %v623 = vld [vmem:[#allocation10 + $0x138] sm:$0xff]
    %v624 = vld [vmem:[#allocation10 + $0x140] sm:$0xff]
    %v625 = vld [vmem:[#allocation10 + $0x148] sm:$0xff]
    %v626 = vld [vmem:[#allocation10 + $0x150] sm:$0xff]
    %v627 = vld [vmem:[#allocation10 + $0x158] sm:$0xff]
    %v628 = vld [vmem:[#allocation10 + $0x160] sm:$0xff]
    %v629 = vld [vmem:[#allocation10 + $0x168] sm:$0xff]
    %v630 = vld [vmem:[#allocation10 + $0x170] sm:$0xff]
    %v631 = vld [vmem:[#allocation10 + $0x178] sm:$0xff]
    %v632 = vld [vmem:[#allocation10 + $0x180] sm:$0xff]
    %v633 = vld [vmem:[#allocation10 + $0x188] sm:$0xff]
    %v634 = vld [vmem:[#allocation10 + $0x190] sm:$0xff]
    %v635 = vld [vmem:[#allocation10 + $0x198] sm:$0xff]
    %v636 = vld [vmem:[#allocation10 + $0x1a0] sm:$0xff]
    %v637 = vld [vmem:[#allocation10 + $0x1a8] sm:$0xff]
    %v638 = vld [vmem:[#allocation10 + $0x1b0] sm:$0xff]
    %v639 = vld [vmem:[#allocation10 + $0x1b8] sm:$0xff]
    %v640 = vld [vmem:[#allocation10 + $0x1c0] sm:$0xff]
    %v641 = vld [vmem:[#allocation10 + $0x1c8] sm:$0xff]
    %v642 = vld [vmem:[#allocation10 + $0x1d0] sm:$0xff]
    %v643 = vld [vmem:[#allocation10 + $0x1d8] sm:$0xff]
    %v644 = vld [vmem:[#allocation10 + $0x1e0] sm:$0xff]
    %v645 = vld [vmem:[#allocation10 + $0x1e8] sm:$0xff]
    %v646 = vld [vmem:[#allocation10 + $0x1f0] sm:$0xff]
    %v647 = vld [vmem:[#allocation10 + $0x1f8] sm:$0xff]
    %v648 = vld [vmem:[#allocation10 + $0x200] sm:$0xff]
    %v649 = vld [vmem:[#allocation10 + $0x208] sm:$0xff]
    %v650 = vld [vmem:[#allocation10 + $0x210] sm:$0xff]
    %v651 = vld [vmem:[#allocation10 + $0x218] sm:$0xff]
    %v652 = vld [vmem:[#allocation10 + $0x220] sm:$0xff]
    %v653 = vld [vmem:[#allocation10 + $0x228] sm:$0xff]
    %v654 = vld [vmem:[#allocation10 + $0x230] sm:$0xff]
    %v655 = vld [vmem:[#allocation10 + $0x238] sm:$0xff]
    %v656 = vld [vmem:[#allocation10 + $0x240] sm:$0xff]
    %v657 = vld [vmem:[#allocation10 + $0x248] sm:$0xff]
    %v658 = vld [vmem:[#allocation10 + $0x250] sm:$0xff]
    %v659 = vld [vmem:[#allocation10 + $0x258] sm:$0xff]
    %v660 = vld [vmem:[#allocation10 + $0x260] sm:$0xff]
    %v661 = vld [vmem:[#allocation10 + $0x268] sm:$0xff]
    %v662 = vld [vmem:[#allocation10 + $0x270] sm:$0xff]
    %v663 = vld [vmem:[#allocation10 + $0x278] sm:$0xff]
    %v664 = vld [vmem:[#allocation10 + $0x280] sm:$0xff]
    %v665 = vld [vmem:[#allocation10 + $0x288] sm:$0xff]
    %v666 = vld [vmem:[#allocation10 + $0x290] sm:$0xff]
    %v667 = vld [vmem:[#allocation10 + $0x298] sm:$0xff]
    %v668 = vld [vmem:[#allocation10 + $0x2a0] sm:$0xff]
    %v669 = vld [vmem:[#allocation10 + $0x2a8] sm:$0xff]
    %v670 = vld [vmem:[#allocation10 + $0x2b0] sm:$0xff]
    %v671 = vld [vmem:[#allocation10 + $0x2b8] sm:$0xff]
    %v672 = vld [vmem:[#allocation10 + $0x2c0] sm:$0xff]
    %v673 = vld [vmem:[#allocation10 + $0x2c8] sm:$0xff]
    %v674 = vld [vmem:[#allocation10 + $0x2d0] sm:$0xff]
    %v675 = vld [vmem:[#allocation10 + $0x2d8] sm:$0xff]
    %v676 = vld [vmem:[#allocation10 + $0x2e0] sm:$0xff]
    %v677 = vld [vmem:[#allocation10 + $0x2e8] sm:$0xff]
    %v678 = vld [vmem:[#allocation10 + $0x2f0] sm:$0xff]
    %v679 = vld [vmem:[#allocation10 + $0x2f8] sm:$0xff]
    %v680 = vld [vmem:[#allocation10 + $0x300] sm:$0xff]
    %v681 = vld [vmem:[#allocation10 + $0x308] sm:$0xff]
    %v682 = vld [vmem:[#allocation10 + $0x310] sm:$0xff]
    %v683 = vld [vmem:[#allocation10 + $0x318] sm:$0xff]
    %v684 = vld [vmem:[#allocation10 + $0x320] sm:$0xff]
    %v685 = vld [vmem:[#allocation10 + $0x328] sm:$0xff]
    %v686 = vld [vmem:[#allocation10 + $0x330] sm:$0xff]
    %v687 = vld [vmem:[#allocation10 + $0x338] sm:$0xff]
    %v688 = vld [vmem:[#allocation10 + $0x340] sm:$0xff]
    %v689 = vld [vmem:[#allocation10 + $0x348] sm:$0xff]
    %v690 = vld [vmem:[#allocation10 + $0x350] sm:$0xff]
    %v691 = vld [vmem:[#allocation10 + $0x358] sm:$0xff]
    %v692 = vld [vmem:[#allocation10 + $0x360] sm:$0xff]
    %v693 = vld [vmem:[#allocation10 + $0x368] sm:$0xff]
    %v694 = vld [vmem:[#allocation10 + $0x370] sm:$0xff]
    %v695 = vld [vmem:[#allocation10 + $0x378] sm:$0xff]
    %v696 = vld [vmem:[#allocation10 + $0x380] sm:$0xff]
    %v697 = vld [vmem:[#allocation10 + $0x388] sm:$0xff]
    %v698 = vld [vmem:[#allocation10 + $0x390] sm:$0xff]
    %v699 = vld [vmem:[#allocation10 + $0x398] sm:$0xff]
    %v700 = vld [vmem:[#allocation10 + $0x3a0] sm:$0xff]
    %v701 = vld [vmem:[#allocation10 + $0x3a8] sm:$0xff]
    %v702 = vld [vmem:[#allocation10 + $0x3b0] sm:$0xff]
    %v703 = vld [vmem:[#allocation10 + $0x3b8] sm:$0xff]
    %v704 = vld [vmem:[#allocation10 + $0x3c0] sm:$0xff]
    %v705 = vld [vmem:[#allocation10 + $0x3c8] sm:$0xff]
    %v706 = vld [vmem:[#allocation10 + $0x3d0] sm:$0xff]
    %v707 = vld [vmem:[#allocation10 + $0x3d8] sm:$0xff]
    %v708 = vld [vmem:[#allocation10 + $0x3e0] sm:$0xff]
    %v709 = vld [vmem:[#allocation10 + $0x3e8] sm:$0xff]
    %v710 = vld [vmem:[#allocation10 + $0x3f0] sm:$0xff]
    %v711 = vld [vmem:[#allocation10 + $0x3f8] sm:$0xff]
    %v712 = vld [vmem:[#allocation10 + $0x400] sm:$0xff]
    %v713 = vld [vmem:[#allocation10 + $0x408] sm:$0xff]
    %v714 = vld [vmem:[#allocation10 + $0x410] sm:$0xff]
    %v715 = vld [vmem:[#allocation10 + $0x418] sm:$0xff]
    %v716 = vld [vmem:[#allocation10 + $0x420] sm:$0xff]
    %v717 = vld [vmem:[#allocation10 + $0x428] sm:$0xff]
    %v718 = vld [vmem:[#allocation10 + $0x430] sm:$0xff]
    %v719 = vld [vmem:[#allocation10 + $0x438] sm:$0xff]
    %v720 = vld [vmem:[#allocation10 + $0x440] sm:$0xff]
    %v721 = vld [vmem:[#allocation10 + $0x448] sm:$0xff]
    %v722 = vld [vmem:[#allocation10 + $0x450] sm:$0xff]
    %v723 = vld [vmem:[#allocation10 + $0x458] sm:$0xff]
    %v724 = vld [vmem:[#allocation10 + $0x460] sm:$0xff]
    %v725 = vld [vmem:[#allocation10 + $0x468] sm:$0xff]
    %v726 = vld [vmem:[#allocation10 + $0x470] sm:$0xff]
    %v727 = vld [vmem:[#allocation10 + $0x478] sm:$0xff]
    %v728 = vld [vmem:[#allocation10 + $0x480] sm:$0xff]
    %v729 = vld [vmem:[#allocation10 + $0x488] sm:$0xff]
    %v730 = vld [vmem:[#allocation10 + $0x490] sm:$0xff]
    %v731 = vld [vmem:[#allocation10 + $0x498] sm:$0xff]
    %v732 = vld [vmem:[#allocation10 + $0x4a0] sm:$0xff]
    %v733 = vld [vmem:[#allocation10 + $0x4a8] sm:$0xff]
    %v734 = vld [vmem:[#allocation10 + $0x4b0] sm:$0xff]
    %v735 = vld [vmem:[#allocation10 + $0x4b8] sm:$0xff]
    %v736 = vld [vmem:[#allocation10 + $0x4c0] sm:$0xff]
    %v737 = vld [vmem:[#allocation10 + $0x4c8] sm:$0xff]
    %v738 = vld [vmem:[#allocation10 + $0x4d0] sm:$0xff]
    %v739 = vld [vmem:[#allocation10 + $0x4d8] sm:$0xff]
    %v740 = vld [vmem:[#allocation10 + $0x4e0] sm:$0xff]
    %v741 = vld [vmem:[#allocation10 + $0x4e8] sm:$0xff]
    %v742 = vld [vmem:[#allocation10 + $0x4f0] sm:$0xff]
    %v743 = vld [vmem:[#allocation10 + $0x4f8] sm:$0xff]
    %v744 = vld [vmem:[%s6] sm:$0x1f]
    %v746 = vlaneseq
    %v747 = vshrl.u32 %v746, 7
    %v748 = vsub.s32 0, %v747
    %v749 = vrot.slane %v744, %v748
    %v750 = vlaneseq
    %v751 = vshrl.u32 %v750, 7
    %v752 = vsub.s32 1, %v751
    %v753 = vrot.slane %v744, %v752
    %v754 = vlaneseq
    %v755 = vshrl.u32 %v754, 7
    %v756 = vsub.s32 2, %v755
    %v757 = vrot.slane %v744, %v756
    %v758 = vlaneseq
    %v759 = vshrl.u32 %v758, 7
    %v760 = vsub.s32 3, %v759
    %v761 = vrot.slane %v744, %v760
    %v762 = vlaneseq
    %v763 = vshrl.u32 %v762, 7
    %v764 = vsub.s32 4, %v763
    %v765 = vrot.slane %v744, %v764
    %771 = vmatprep.subr.mxu0 %v660
    %772 = vmatpush1.msra.mxu0 %v659
    %773 = vmatprep.subr.mxu0 %v655
    %774 = vmatpush1.msra.mxu0 %v654
    %775 = vmatprep.subr.mxu0 %v650
    %776 = vmatpush1.msra.mxu0 %v649
    %777 = vmatprep.subr.mxu0 %v645
    %778 = vmatpush1.msra.mxu0 %v644
    %779 = vmatprep.subr.mxu0 %v640
    %780 = vmatpush1.msra.mxu0 %v639
    %781 = vmatprep.subr.mxu0 %v635
    %782 = vmatpush1.msra.mxu0 %v634
    %783 = vmatprep.subr.mxu0 %v630
    %784 = vmatpush1.msra.mxu0 %v629
    %785 = vmatprep.subr.mxu0 %v625
    %786 = vmatpush1.msra.mxu0 %v624
    %787 = vmatprep.subr.mxu0 %v620
    %788 = vmatpush1.msra.mxu0 %v619
    %789 = vmatprep.subr.mxu0 %v615
    %790 = vmatpush1.msra.mxu0 %v614
    %791 = vmatprep.subr.mxu0 %v610
    %792 = vmatpush1.msra.mxu0 %v609
    %793 = vmatprep.subr.mxu0 %v605
    %794 = vmatpush1.msra.mxu0 %v604
    %795 = vmatprep.subr.mxu0 %v600
    %796 = vmatpush1.msra.mxu0 %v599
    %797 = vmatprep.subr.mxu0 %v595
    %798 = vmatpush1.msra.mxu0 %v594
    %799 = vmatprep.subr.mxu0 %v590
    %800 = vmatpush1.msra.mxu0 %v589
    %801 = vmatprep.subr.mxu0 %v585
    %802 = vmatpush1.msra.mxu0 %v584
    %803 = vmatprep.subr.mxu0 %v740
    %804 = vmatpush2.msra.mxu0 %v739
    %805 = vmatprep.subr.mxu0 %v735
    %806 = vmatpush2.msra.mxu0 %v734
    %807 = vmatprep.subr.mxu0 %v730
    %808 = vmatpush2.msra.mxu0 %v729
    %809 = vmatprep.subr.mxu0 %v725
    %810 = vmatpush2.msra.mxu0 %v724
    %811 = vmatprep.subr.mxu0 %v720
    %812 = vmatpush2.msra.mxu0 %v719
    %813 = vmatprep.subr.mxu0 %v715
    %814 = vmatpush2.msra.mxu0 %v714
    %815 = vmatprep.subr.mxu0 %v710
    %816 = vmatpush2.msra.mxu0 %v709
    %817 = vmatprep.subr.mxu0 %v705
    %818 = vmatpush2.msra.mxu0 %v704
    %819 = vmatprep.subr.mxu0 %v700
    %820 = vmatpush2.msra.mxu0 %v699
    %821 = vmatprep.subr.mxu0 %v695
    %822 = vmatpush2.msra.mxu0 %v694
    %823 = vmatprep.subr.mxu0 %v690
    %824 = vmatpush2.msra.mxu0 %v689
    %825 = vmatprep.subr.mxu0 %v685
    %826 = vmatpush2.msra.mxu0 %v684
    %827 = vmatprep.subr.mxu0 %v680
    %828 = vmatpush2.msra.mxu0 %v679
    %829 = vmatprep.subr.mxu0 %v675
    %830 = vmatpush2.msra.mxu0 %v674
    %831 = vmatprep.subr.mxu0 %v670
    %832 = vmatpush2.msra.mxu0 %v669
    %833 = vmatprep.subr.mxu0 %v665
    %834 = vmatpush2.msra.mxu0 %v664
    %835 = vmatprep.mubr.f32.mxu0 %v583
    %836 = vmatmul.mubr.f32.gmra.mxu0 %v582
    %v837 = vpop.f32.mrf.mxu0
    %v838 = vadd.f32 %v749, %v837
    %v839 = vpop.f32.mrf.mxu0
    %v840 = vadd.f32 %v753, %v839
    %841 = vdwg.mxu0
    %842 = vmatprep.subr.mxu0 %v662
    %843 = vmatpush1.msra.mxu0 %v661
    %844 = vmatprep.subr.mxu0 %v657
    %845 = vmatpush1.msra.mxu0 %v656
    %846 = vmatprep.subr.mxu0 %v652
    %847 = vmatpush1.msra.mxu0 %v651
    %848 = vmatprep.subr.mxu0 %v647
    %849 = vmatpush1.msra.mxu0 %v646
    %850 = vmatprep.subr.mxu0 %v642
    %851 = vmatpush1.msra.mxu0 %v641
    %852 = vmatprep.subr.mxu0 %v637
    %853 = vmatpush1.msra.mxu0 %v636
    %854 = vmatprep.subr.mxu0 %v632
    %855 = vmatpush1.msra.mxu0 %v631
    %856 = vmatprep.subr.mxu0 %v627
    %857 = vmatpush1.msra.mxu0 %v626
    %858 = vmatprep.subr.mxu0 %v622
    %859 = vmatpush1.msra.mxu0 %v621
    %860 = vmatprep.subr.mxu0 %v617
    %861 = vmatpush1.msra.mxu0 %v616
    %862 = vmatprep.subr.mxu0 %v612
    %863 = vmatpush1.msra.mxu0 %v611
    %864 = vmatprep.subr.mxu0 %v607
    %865 = vmatpush1.msra.mxu0 %v606
    %866 = vmatprep.subr.mxu0 %v602
    %867 = vmatpush1.msra.mxu0 %v601
    %868 = vmatprep.subr.mxu0 %v597
    %869 = vmatpush1.msra.mxu0 %v596
    %870 = vmatprep.subr.mxu0 %v592
    %871 = vmatpush1.msra.mxu0 %v591
    %872 = vmatprep.subr.mxu0 %v587
    %873 = vmatpush1.msra.mxu0 %v586
    %874 = vmatprep.subr.mxu0 %v742
    %875 = vmatpush2.msra.mxu0 %v741
    %876 = vmatprep.subr.mxu0 %v737
    %877 = vmatpush2.msra.mxu0 %v736
    %878 = vmatprep.subr.mxu0 %v732
    %879 = vmatpush2.msra.mxu0 %v731
    %880 = vmatprep.subr.mxu0 %v727
    %881 = vmatpush2.msra.mxu0 %v726
    %882 = vmatprep.subr.mxu0 %v722
    %883 = vmatpush2.msra.mxu0 %v721
    %884 = vmatprep.subr.mxu0 %v717
    %885 = vmatpush2.msra.mxu0 %v716
    %886 = vmatprep.subr.mxu0 %v712
    %887 = vmatpush2.msra.mxu0 %v711
    %888 = vmatprep.subr.mxu0 %v707
    %889 = vmatpush2.msra.mxu0 %v706
    %890 = vmatprep.subr.mxu0 %v702
    %891 = vmatpush2.msra.mxu0 %v701
    %892 = vmatprep.subr.mxu0 %v697
    %893 = vmatpush2.msra.mxu0 %v696
    %894 = vmatprep.subr.mxu0 %v692
    %895 = vmatpush2.msra.mxu0 %v691
    %896 = vmatprep.subr.mxu0 %v687
    %897 = vmatpush2.msra.mxu0 %v686
    %898 = vmatprep.subr.mxu0 %v682
    %899 = vmatpush2.msra.mxu0 %v681
    %900 = vmatprep.subr.mxu0 %v677
    %901 = vmatpush2.msra.mxu0 %v676
    %902 = vmatprep.subr.mxu0 %v672
    %903 = vmatpush2.msra.mxu0 %v671
    %904 = vmatprep.subr.mxu0 %v667
    %905 = vmatpush2.msra.mxu0 %v666
    %906 = vmatprep.mubr.f32.mxu0 %v583
    %907 = vmatmul.mubr.f32.gmra.mxu0 %v582
    %v908 = vpop.f32.mrf.mxu0
    %v909 = vadd.f32 %v757, %v908
    %v910 = vpop.f32.mrf.mxu0
    %v911 = vadd.f32 %v761, %v910
    %912 = vdwg.mxu0
    %913 = vmatprep.subr.mxu0 0.0
    %914 = vmatpush1.msra.mxu0 %v663
    %915 = vmatprep.subr.mxu0 0.0
    %916 = vmatpush1.msra.mxu0 %v658
    %917 = vmatprep.subr.mxu0 0.0
    %918 = vmatpush1.msra.mxu0 %v653
    %919 = vmatprep.subr.mxu0 0.0
    %920 = vmatpush1.msra.mxu0 %v648
    %921 = vmatprep.subr.mxu0 0.0
    %922 = vmatpush1.msra.mxu0 %v643
    %923 = vmatprep.subr.mxu0 0.0
    %924 = vmatpush1.msra.mxu0 %v638
    %925 = vmatprep.subr.mxu0 0.0
    %926 = vmatpush1.msra.mxu0 %v633
    %927 = vmatprep.subr.mxu0 0.0
    %928 = vmatpush1.msra.mxu0 %v628
    %929 = vmatprep.subr.mxu0 0.0
    %930 = vmatpush1.msra.mxu0 %v623
    %931 = vmatprep.subr.mxu0 0.0
    %932 = vmatpush1.msra.mxu0 %v618
    %933 = vmatprep.subr.mxu0 0.0
    %934 = vmatpush1.msra.mxu0 %v613
    %935 = vmatprep.subr.mxu0 0.0
    %936 = vmatpush1.msra.mxu0 %v608
    %937 = vmatprep.subr.mxu0 0.0
    %938 = vmatpush1.msra.mxu0 %v603
    %939 = vmatprep.subr.mxu0 0.0
    %940 = vmatpush1.msra.mxu0 %v598
    %941 = vmatprep.subr.mxu0 0.0
    %942 = vmatpush1.msra.mxu0 %v593
    %943 = vmatprep.subr.mxu0 0.0
    %944 = vmatpush1.msra.mxu0 %v588
    %945 = vmatprep.subr.mxu0 0.0
    %946 = vmatpush2.msra.mxu0 %v743
    %947 = vmatprep.subr.mxu0 0.0
    %948 = vmatpush2.msra.mxu0 %v738
    %949 = vmatprep.subr.mxu0 0.0
    %950 = vmatpush2.msra.mxu0 %v733
    %951 = vmatprep.subr.mxu0 0.0
    %952 = vmatpush2.msra.mxu0 %v728
    %953 = vmatprep.subr.mxu0 0.0
    %954 = vmatpush2.msra.mxu0 %v723
    %955 = vmatprep.subr.mxu0 0.0
    %956 = vmatpush2.msra.mxu0 %v718
    %957 = vmatprep.subr.mxu0 0.0
    %958 = vmatpush2.msra.mxu0 %v713
    %959 = vmatprep.subr.mxu0 0.0
    %960 = vmatpush2.msra.mxu0 %v708
    %961 = vmatprep.subr.mxu0 0.0
    %962 = vmatpush2.msra.mxu0 %v703
    %963 = vmatprep.subr.mxu0 0.0
    %964 = vmatpush2.msra.mxu0 %v698
    %965 = vmatprep.subr.mxu0 0.0
    %966 = vmatpush2.msra.mxu0 %v693
    %967 = vmatprep.subr.mxu0 0.0
    %968 = vmatpush2.msra.mxu0 %v688
    %969 = vmatprep.subr.mxu0 0.0
    %970 = vmatpush2.msra.mxu0 %v683
    %971 = vmatprep.subr.mxu0 0.0
    %972 = vmatpush2.msra.mxu0 %v678
    %973 = vmatprep.subr.mxu0 0.0
    %974 = vmatpush2.msra.mxu0 %v673
    %975 = vmatprep.subr.mxu0 0.0
    %976 = vmatpush2.msra.mxu0 %v668
    %977 = vmatprep.mubr.f32.mxu0 %v583
    %978 = vmatmul.mubr.f32.gmra.mxu0 %v582
    %v979 = vpop.f32.mrf.mxu0
    %v980 = vadd.f32 %v765, %v979
    %v981 = vpop.f32.mrf.mxu0
    %982 = vdwg.mxu0
    %v983 = vmax.f32 %v838, 0.0
    %v984 = vmax.f32 %v840, 0.0
    %v985 = vmax.f32 %v909, 0.0
    %v986 = vmax.f32 %v911, 0.0
    %v987 = vmax.f32 %v980, 0.0
    %v988 = vld [vmem:[#allocation11] sm:$0xff]
    %v989 = vld [vmem:[#allocation11 + $0x8] sm:$0xff]
    %v990 = vld [vmem:[#allocation11 + $0x10] sm:$0xff]
    %v991 = vld [vmem:[#allocation11 + $0x18] sm:$0xff]
    %v992 = vld [vmem:[#allocation11 + $0x20] sm:$0xff]
    %v993 = vld [vmem:[#allocation11 + $0x28] sm:$0xff]
    %v994 = vld [vmem:[#allocation11 + $0x30] sm:$0xff]
    %v995 = vld [vmem:[#allocation11 + $0x38] sm:$0xff]
    %v996 = vld [vmem:[#allocation11 + $0x40] sm:$0xff]
    %v997 = vld [vmem:[#allocation11 + $0x48] sm:$0xff]
    %v998 = vld [vmem:[#allocation11 + $0x50] sm:$0xff]
    %v999 = vld [vmem:[#allocation11 + $0x58] sm:$0xff]
    %v1000 = vld [vmem:[#allocation11 + $0x60] sm:$0xff]
    %v1001 = vld [vmem:[#allocation11 + $0x68] sm:$0xff]
    %v1002 = vld [vmem:[#allocation11 + $0x70] sm:$0xff]
    %v1003 = vld [vmem:[#allocation11 + $0x78] sm:$0xff]
    %v1004 = vld [vmem:[#allocation11 + $0x80] sm:$0xff]
    %v1005 = vld [vmem:[#allocation11 + $0x88] sm:$0xff]
    %v1006 = vld [vmem:[#allocation11 + $0x90] sm:$0xff]
    %v1007 = vld [vmem:[#allocation11 + $0x98] sm:$0xff]
    %v1008 = vld [vmem:[#allocation11 + $0xa0] sm:$0xff]
    %v1009 = vld [vmem:[#allocation11 + $0xa8] sm:$0xff]
    %v1010 = vld [vmem:[#allocation11 + $0xb0] sm:$0xff]
    %v1011 = vld [vmem:[#allocation11 + $0xb8] sm:$0xff]
    %v1012 = vld [vmem:[#allocation11 + $0xc0] sm:$0xff]
    %v1013 = vld [vmem:[#allocation11 + $0xc8] sm:$0xff]
    %v1014 = vld [vmem:[#allocation11 + $0xd0] sm:$0xff]
    %v1015 = vld [vmem:[#allocation11 + $0xd8] sm:$0xff]
    %v1016 = vld [vmem:[#allocation11 + $0xe0] sm:$0xff]
    %v1017 = vld [vmem:[#allocation11 + $0xe8] sm:$0xff]
    %v1018 = vld [vmem:[#allocation11 + $0xf0] sm:$0xff]
    %v1019 = vld [vmem:[#allocation11 + $0xf8] sm:$0xff]
    %v1020 = vld [vmem:[#allocation11 + $0x100] sm:$0xff]
    %v1021 = vld [vmem:[#allocation11 + $0x108] sm:$0xff]
    %v1022 = vld [vmem:[#allocation11 + $0x110] sm:$0xff]
    %v1023 = vld [vmem:[#allocation11 + $0x118] sm:$0xff]
    %v1024 = vld [vmem:[#allocation11 + $0x120] sm:$0xff]
    %v1025 = vld [vmem:[#allocation11 + $0x128] sm:$0xff]
    %v1026 = vld [vmem:[#allocation11 + $0x130] sm:$0xff]
    %v1027 = vld [vmem:[#allocation11 + $0x138] sm:$0xff]
    %v1028 = vld [vmem:[#allocation11 + $0x140] sm:$0xff]
    %v1029 = vld [vmem:[#allocation11 + $0x148] sm:$0xff]
    %v1030 = vld [vmem:[#allocation11 + $0x150] sm:$0xff]
    %v1031 = vld [vmem:[#allocation11 + $0x158] sm:$0xff]
    %v1032 = vld [vmem:[#allocation11 + $0x160] sm:$0xff]
    %v1033 = vld [vmem:[#allocation11 + $0x168] sm:$0xff]
    %v1034 = vld [vmem:[#allocation11 + $0x170] sm:$0xff]
    %v1035 = vld [vmem:[#allocation11 + $0x178] sm:$0xff]
    %v1036 = vld [vmem:[#allocation11 + $0x180] sm:$0xff]
    %v1037 = vld [vmem:[#allocation11 + $0x188] sm:$0xff]
    %v1038 = vld [vmem:[#allocation11 + $0x190] sm:$0xff]
    %v1039 = vld [vmem:[#allocation11 + $0x198] sm:$0xff]
    %v1040 = vld [vmem:[#allocation11 + $0x1a0] sm:$0xff]
    %v1041 = vld [vmem:[#allocation11 + $0x1a8] sm:$0xff]
    %v1042 = vld [vmem:[#allocation11 + $0x1b0] sm:$0xff]
    %v1043 = vld [vmem:[#allocation11 + $0x1b8] sm:$0xff]
    %v1044 = vld [vmem:[#allocation11 + $0x1c0] sm:$0xff]
    %v1045 = vld [vmem:[#allocation11 + $0x1c8] sm:$0xff]
    %v1046 = vld [vmem:[#allocation11 + $0x1d0] sm:$0xff]
    %v1047 = vld [vmem:[#allocation11 + $0x1d8] sm:$0xff]
    %v1048 = vld [vmem:[#allocation11 + $0x1e0] sm:$0xff]
    %v1049 = vld [vmem:[#allocation11 + $0x1e8] sm:$0xff]
    %v1050 = vld [vmem:[#allocation11 + $0x1f0] sm:$0xff]
    %v1051 = vld [vmem:[#allocation11 + $0x1f8] sm:$0xff]
    %v1052 = vld [vmem:[#allocation11 + $0x200] sm:$0xff]
    %v1053 = vld [vmem:[#allocation11 + $0x208] sm:$0xff]
    %v1054 = vld [vmem:[#allocation11 + $0x210] sm:$0xff]
    %v1055 = vld [vmem:[#allocation11 + $0x218] sm:$0xff]
    %v1056 = vld [vmem:[#allocation11 + $0x220] sm:$0xff]
    %v1057 = vld [vmem:[#allocation11 + $0x228] sm:$0xff]
    %v1058 = vld [vmem:[#allocation11 + $0x230] sm:$0xff]
    %v1059 = vld [vmem:[#allocation11 + $0x238] sm:$0xff]
    %v1060 = vld [vmem:[#allocation11 + $0x240] sm:$0xff]
    %v1061 = vld [vmem:[#allocation11 + $0x248] sm:$0xff]
    %v1062 = vld [vmem:[#allocation11 + $0x250] sm:$0xff]
    %v1063 = vld [vmem:[#allocation11 + $0x258] sm:$0xff]
    %v1064 = vld [vmem:[#allocation11 + $0x260] sm:$0xff]
    %v1065 = vld [vmem:[#allocation11 + $0x268] sm:$0xff]
    %v1066 = vld [vmem:[#allocation11 + $0x270] sm:$0xff]
    %v1067 = vld [vmem:[#allocation11 + $0x278] sm:$0xff]
    %v1068 = vld [vmem:[%s8] sm:$0x1]
    %v1070 = vlaneseq
    %v1071 = vshrl.u32 %v1070, 7
    %v1072 = vsub.s32 0, %v1071
    %v1073 = vrot.slane %v1068, %v1072
    %1075 = vmatprep.subr.mxu0 0.0
    %1076 = vmatpush1.msra.mxu0 %v1003
    %1077 = vmatprep.subr.mxu0 0.0
    %1078 = vmatpush1.msra.mxu0 %v1002
    %1079 = vmatprep.subr.mxu0 0.0
    %1080 = vmatpush1.msra.mxu0 %v1001
    %1081 = vmatprep.subr.mxu0 0.0
    %1082 = vmatpush1.msra.mxu0 %v1000
    %1083 = vmatprep.subr.mxu0 0.0
    %1084 = vmatpush1.msra.mxu0 %v999
    %1085 = vmatprep.subr.mxu0 0.0
    %1086 = vmatpush1.msra.mxu0 %v998
    %1087 = vmatprep.subr.mxu0 0.0
    %1088 = vmatpush1.msra.mxu0 %v997
    %1089 = vmatprep.subr.mxu0 0.0
    %1090 = vmatpush1.msra.mxu0 %v996
    %1091 = vmatprep.subr.mxu0 0.0
    %1092 = vmatpush1.msra.mxu0 %v995
    %1093 = vmatprep.subr.mxu0 0.0
    %1094 = vmatpush1.msra.mxu0 %v994
    %1095 = vmatprep.subr.mxu0 0.0
    %1096 = vmatpush1.msra.mxu0 %v993
    %1097 = vmatprep.subr.mxu0 0.0
    %1098 = vmatpush1.msra.mxu0 %v992
    %1099 = vmatprep.subr.mxu0 0.0
    %1100 = vmatpush1.msra.mxu0 %v991
    %1101 = vmatprep.subr.mxu0 0.0
    %1102 = vmatpush1.msra.mxu0 %v990
    %1103 = vmatprep.subr.mxu0 0.0
    %1104 = vmatpush1.msra.mxu0 %v989
    %1105 = vmatprep.subr.mxu0 0.0
    %1106 = vmatpush1.msra.mxu0 %v988
    %1107 = vmatprep.subr.mxu0 0.0
    %1108 = vmatpush2.msra.mxu0 %v1019
    %1109 = vmatprep.subr.mxu0 0.0
    %1110 = vmatpush2.msra.mxu0 %v1018
    %1111 = vmatprep.subr.mxu0 0.0
    %1112 = vmatpush2.msra.mxu0 %v1017
    %1113 = vmatprep.subr.mxu0 0.0
    %1114 = vmatpush2.msra.mxu0 %v1016
    %1115 = vmatprep.subr.mxu0 0.0
    %1116 = vmatpush2.msra.mxu0 %v1015
    %1117 = vmatprep.subr.mxu0 0.0
    %1118 = vmatpush2.msra.mxu0 %v1014
    %1119 = vmatprep.subr.mxu0 0.0
    %1120 = vmatpush2.msra.mxu0 %v1013
    %1121 = vmatprep.subr.mxu0 0.0
    %1122 = vmatpush2.msra.mxu0 %v1012
    %1123 = vmatprep.subr.mxu0 0.0
    %1124 = vmatpush2.msra.mxu0 %v1011
    %1125 = vmatprep.subr.mxu0 0.0
    %1126 = vmatpush2.msra.mxu0 %v1010
    %1127 = vmatprep.subr.mxu0 0.0
    %1128 = vmatpush2.msra.mxu0 %v1009
    %1129 = vmatprep.subr.mxu0 0.0
    %1130 = vmatpush2.msra.mxu0 %v1008
    %1131 = vmatprep.subr.mxu0 0.0
    %1132 = vmatpush2.msra.mxu0 %v1007
    %1133 = vmatprep.subr.mxu0 0.0
    %1134 = vmatpush2.msra.mxu0 %v1006
    %1135 = vmatprep.subr.mxu0 0.0
    %1136 = vmatpush2.msra.mxu0 %v1005
    %1137 = vmatprep.subr.mxu0 0.0
    %1138 = vmatpush2.msra.mxu0 %v1004
    %1139 = vmatprep.mubr.f32.mxu0 %v984
    %1140 = vmatmul.mubr.f32.gmra.mxu0 %v983
    %v1141 = vpop.f32.mrf.mxu0
    %v1142 = vadd.f32 %v1073, %v1141
    %v1143 = vpop.f32.mrf.mxu0
    %1144 = vdwg.mxu0
    %1145 = vmatprep.subr.mxu0 0.0
    %1146 = vmatpush1.msra.mxu0 %v1035
    %1147 = vmatprep.subr.mxu0 0.0
    %1148 = vmatpush1.msra.mxu0 %v1034
    %1149 = vmatprep.subr.mxu0 0.0
    %1150 = vmatpush1.msra.mxu0 %v1033
    %1151 = vmatprep.subr.mxu0 0.0
    %1152 = vmatpush1.msra.mxu0 %v1032
    %1153 = vmatprep.subr.mxu0 0.0
    %1154 = vmatpush1.msra.mxu0 %v1031
    %1155 = vmatprep.subr.mxu0 0.0
    %1156 = vmatpush1.msra.mxu0 %v1030
    %1157 = vmatprep.subr.mxu0 0.0
    %1158 = vmatpush1.msra.mxu0 %v1029
    %1159 = vmatprep.subr.mxu0 0.0
    %1160 = vmatpush1.msra.mxu0 %v1028
    %1161 = vmatprep.subr.mxu0 0.0
    %1162 = vmatpush1.msra.mxu0 %v1027
    %1163 = vmatprep.subr.mxu0 0.0
    %1164 = vmatpush1.msra.mxu0 %v1026
    %1165 = vmatprep.subr.mxu0 0.0
    %1166 = vmatpush1.msra.mxu0 %v1025
    %1167 = vmatprep.subr.mxu0 0.0
    %1168 = vmatpush1.msra.mxu0 %v1024
    %1169 = vmatprep.subr.mxu0 0.0
    %1170 = vmatpush1.msra.mxu0 %v1023
    %1171 = vmatprep.subr.mxu0 0.0
    %1172 = vmatpush1.msra.mxu0 %v1022
    %1173 = vmatprep.subr.mxu0 0.0
    %1174 = vmatpush1.msra.mxu0 %v1021
    %1175 = vmatprep.subr.mxu0 0.0
    %1176 = vmatpush1.msra.mxu0 %v1020
    %1177 = vmatprep.subr.mxu0 0.0
    %1178 = vmatpush2.msra.mxu0 %v1051
    %1179 = vmatprep.subr.mxu0 0.0
    %1180 = vmatpush2.msra.mxu0 %v1050
    %1181 = vmatprep.subr.mxu0 0.0
    %1182 = vmatpush2.msra.mxu0 %v1049
    %1183 = vmatprep.subr.mxu0 0.0
    %1184 = vmatpush2.msra.mxu0 %v1048
    %1185 = vmatprep.subr.mxu0 0.0
    %1186 = vmatpush2.msra.mxu0 %v1047
    %1187 = vmatprep.subr.mxu0 0.0
    %1188 = vmatpush2.msra.mxu0 %v1046
    %1189 = vmatprep.subr.mxu0 0.0
    %1190 = vmatpush2.msra.mxu0 %v1045
    %1191 = vmatprep.subr.mxu0 0.0
    %1192 = vmatpush2.msra.mxu0 %v1044
    %1193 = vmatprep.subr.mxu0 0.0
    %1194 = vmatpush2.msra.mxu0 %v1043
    %1195 = vmatprep.subr.mxu0 0.0
    %1196 = vmatpush2.msra.mxu0 %v1042
    %1197 = vmatprep.subr.mxu0 0.0
    %1198 = vmatpush2.msra.mxu0 %v1041
    %1199 = vmatprep.subr.mxu0 0.0
    %1200 = vmatpush2.msra.mxu0 %v1040
    %1201 = vmatprep.subr.mxu0 0.0
    %1202 = vmatpush2.msra.mxu0 %v1039
    %1203 = vmatprep.subr.mxu0 0.0
    %1204 = vmatpush2.msra.mxu0 %v1038
    %1205 = vmatprep.subr.mxu0 0.0
    %1206 = vmatpush2.msra.mxu0 %v1037
    %1207 = vmatprep.subr.mxu0 0.0
    %1208 = vmatpush2.msra.mxu0 %v1036
    %1209 = vmatprep.mubr.f32.mxu0 %v986
    %1210 = vmatmul.mubr.f32.gmra.mxu0 %v985
    %v1211 = vpop.f32.mrf.mxu0
    %v1212 = vadd.f32 %v1142, %v1211
    %v1213 = vpop.f32.mrf.mxu0
    %1214 = vdwg.mxu0
    %1215 = vmatprep.subr.mxu0 0.0
    %1216 = vmatpush1.msra.mxu0 %v1067
    %1217 = vmatprep.subr.mxu0 0.0
    %1218 = vmatpush1.msra.mxu0 %v1066
    %1219 = vmatprep.subr.mxu0 0.0
    %1220 = vmatpush1.msra.mxu0 %v1065
    %1221 = vmatprep.subr.mxu0 0.0
    %1222 = vmatpush1.msra.mxu0 %v1064
    %1223 = vmatprep.subr.mxu0 0.0
    %1224 = vmatpush1.msra.mxu0 %v1063
    %1225 = vmatprep.subr.mxu0 0.0
    %1226 = vmatpush1.msra.mxu0 %v1062
    %1227 = vmatprep.subr.mxu0 0.0
    %1228 = vmatpush1.msra.mxu0 %v1061
    %1229 = vmatprep.subr.mxu0 0.0
    %1230 = vmatpush1.msra.mxu0 %v1060
    %1231 = vmatprep.subr.mxu0 0.0
    %1232 = vmatpush1.msra.mxu0 %v1059
    %1233 = vmatprep.subr.mxu0 0.0
    %1234 = vmatpush1.msra.mxu0 %v1058
    %1235 = vmatprep.subr.mxu0 0.0
    %1236 = vmatpush1.msra.mxu0 %v1057
    %1237 = vmatprep.subr.mxu0 0.0
    %1238 = vmatpush1.msra.mxu0 %v1056
    %1239 = vmatprep.subr.mxu0 0.0
    %1240 = vmatpush1.msra.mxu0 %v1055
    %1241 = vmatprep.subr.mxu0 0.0
    %1242 = vmatpush1.msra.mxu0 %v1054
    %1243 = vmatprep.subr.mxu0 0.0
    %1244 = vmatpush1.msra.mxu0 %v1053
    %1245 = vmatprep.subr.mxu0 0.0
    %1246 = vmatpush1.msra.mxu0 %v1052
    %1247 = vmatprep.subr.mxu0 0.0
    %1248 = vmatpush2.msra.mxu0 0.0
    %1249 = vmatprep.subr.mxu0 0.0
    %1250 = vmatpush2.msra.mxu0 0.0
    %1251 = vmatprep.subr.mxu0 0.0
    %1252 = vmatpush2.msra.mxu0 0.0
    %1253 = vmatprep.subr.mxu0 0.0
    %1254 = vmatpush2.msra.mxu0 0.0
    %1255 = vmatprep.subr.mxu0 0.0
    %1256 = vmatpush2.msra.mxu0 0.0
    %1257 = vmatprep.subr.mxu0 0.0
    %1258 = vmatpush2.msra.mxu0 0.0
    %1259 = vmatprep.subr.mxu0 0.0
    %1260 = vmatpush2.msra.mxu0 0.0
    %1261 = vmatprep.subr.mxu0 0.0
    %1262 = vmatpush2.msra.mxu0 0.0
    %1263 = vmatprep.subr.mxu0 0.0
    %1264 = vmatpush2.msra.mxu0 0.0
    %1265 = vmatprep.subr.mxu0 0.0
    %1266 = vmatpush2.msra.mxu0 0.0
    %1267 = vmatprep.subr.mxu0 0.0
    %1268 = vmatpush2.msra.mxu0 0.0
    %1269 = vmatprep.subr.mxu0 0.0
    %1270 = vmatpush2.msra.mxu0 0.0
    %1271 = vmatprep.subr.mxu0 0.0
    %1272 = vmatpush2.msra.mxu0 0.0
    %1273 = vmatprep.subr.mxu0 0.0
    %1274 = vmatpush2.msra.mxu0 0.0
    %1275 = vmatprep.subr.mxu0 0.0
    %1276 = vmatpush2.msra.mxu0 0.0
    %1277 = vmatprep.subr.mxu0 0.0
    %1278 = vmatpush2.msra.mxu0 0.0
    %1279 = vmatprep.mubr.f32.mxu0 0.0
    %1280 = vmatmul.mubr.f32.gmra.mxu0 %v987
    %v1281 = vpop.f32.mrf.mxu0
    %v1282 = vadd.f32 %v1212, %v1281
    %v1283 = vpop.f32.mrf.mxu0
    %1284 = vdwg.mxu0
    %v1285 = vxor.u32 %v1282, 2147483648
    %v1286 = vmul.f32 %v1285, 1.442695
    %v1287 = vpow.pop %v1286
    %v1288 = vadd.f32 %v1287, 1.0
    %v1289 = vrcp.pop %v1288
    %v1290 = vmul.f32 1.0, %v1289
    %1291 = vst [vmem:[#allocation13] sm:$0xff] %v1290
    // Predicated region
    $region62: #{actor_forward.1} parent=1 // pred_check
      _
    $region63: #{actor_forward.1} parent=1 // pred_check_branch
      %1293 = sbr.rel (0) target = $region65
    $region64: #{actor_forward.1} parent=1 // pred_region
      %s1295 = ssub.s32 128, 128
      %1296 = vsyncadd [#allocation4], %s1295
      %s1298 = sshll.u32 [#allocation13], 4
      %s1299 = int_to_ptr.vmem [resolvable:$true] %s1298
      %1301 = dma.vmem_to_hbm [thread:$0]  %s1299, 128, %s9, [#allocation4]
    $region65: #{actor_forward.1} parent=1 // pred_fallthru
      _
    // Predicated region
    $region66: #{actor_forward.1} parent=1 // pred_check
      _
    $region67: #{actor_forward.1} parent=1 // pred_check_branch
      %1303 = sbr.rel (0) target = $region69
    $region68: #{actor_forward.1} parent=1 // pred_region
      %1304 = dma.done [#allocation4], 128
    $region69: #{actor_forward.1} parent=1 // pred_fallthru
      _
    %1305 = vsyncpa [#allocation3], 1
    %1306 = vsyncpa [#allocation6], 1
    %1307 = vsyncpa [#allocation9], 1
    %1308 = vsyncpa [#allocation12], 1
    %1309 = vsyncpa [#allocation4], 1

</llo_original>
